<compile_context>
chip_gen: v7x
topology: tpu7x:2x2x1
jax: 0.10.0
libtpu: 0.0.40
codegen_flags: <defaults>
</compile_context>

<pallas_src>
import math
import functools

import jax
import jax.numpy as jnp
from jax.experimental import pallas as pl
from jax.experimental.pallas import tpu as pltpu


def _cross_attn_kernel(seq_ref, cond_ref,
                       wq_ref, bq_ref, wk_ref, bk_ref, wv_ref, bv_ref,
                       wh_ref, bh_ref, gamma_ref, beta_ref,
                       out_ref,
                       kh_scr, vh_scr,
                       *, num_heads: int, eps: float):
    H = num_heads
    seq = seq_ref[0]                         # (TS, D), io dtype
    TS, D = seq.shape
    hd = D // H
    io_dtype = seq.dtype
    f32 = jnp.float32

    # ---- K/V projection: once per batch element, cached head-major in VMEM
    # scratch and reused by every query tile (grid axis 1 is "arbitrary").
    @pl.when(pl.program_id(1) == 0)
    def _():
        cond = cond_ref[0]                   # (T, D)
        T = cond.shape[0]
        k = (jnp.dot(cond, wk_ref[...], preferred_element_type=f32)
             + bk_ref[...]).astype(io_dtype)                  # (T, D)
        v = (jnp.dot(cond, wv_ref[...], preferred_element_type=f32)
             + bv_ref[...]).astype(io_dtype)                  # (T, D)
        kh_scr[...] = pltpu.einshape("thd->htd", k.reshape(T, H, hd))
        vh_scr[...] = pltpu.einshape("thd->htd", v.reshape(T, H, hd))

    # ---- Per-query-tile work ----
    # Q projection: x @ W^T + b, attention scale already folded into Wq / bq.
    q = (jnp.dot(seq, wq_ref[...], preferred_element_type=f32)
         + bq_ref[...]).astype(io_dtype)                      # (TS, D)
    qh = pltpu.einshape("shd->hsd", q.reshape(TS, H, hd))     # (H, TS, hd)

    kh = kh_scr[...]                                          # (H, T, hd)
    vh = vh_scr[...]                                          # (H, T, hd)

    # Scores for all heads at once (scale folded into q).
    s = jnp.einsum("hqd,hkd->hqk", qh, kh,
                   preferred_element_type=f32)                # (H, TS, T) f32

    # Numerically stable softmax over T; normalize AFTER the PV matmul so the
    # divide acts on the (H, TS, hd) output, not the (H, TS, T) scores.
    m = jnp.max(s, axis=-1, keepdims=True)
    p = jnp.exp(s - m)                                        # (H, TS, T) f32
    l = jnp.sum(p, axis=-1, keepdims=True)                    # (H, TS, 1) f32
    o = jnp.einsum("hqk,hkd->hqd", p.astype(io_dtype), vh,
                   preferred_element_type=f32)                # (H, TS, hd) f32
    o = (o * pl.reciprocal(l, approx=True)).astype(io_dtype)  # EUP reciprocal

    # Back to (TS, D) == y.transpose(1, 2).reshape(N, S, D) per batch element.
    y = pltpu.einshape("hsd->shd", o).reshape(TS, D)

    # Output head projection.
    attn = (jnp.dot(y, wh_ref[...], preferred_element_type=f32)
            + bh_ref[...])                                    # (TS, D) f32

    # Residual + LayerNorm (f32 stats, biased variance, like PyTorch).
    x = attn + seq.astype(f32)
    mean = jnp.mean(x, axis=-1, keepdims=True)
    xc = x - mean
    var = jnp.mean(xc * xc, axis=-1, keepdims=True)
    xhat = xc * jax.lax.rsqrt(var + eps)
    out_ref[0] = (xhat * gamma_ref[...] + beta_ref[...]).astype(out_ref.dtype)


def _pick_query_tile(S: int) -> int:
    """128 if it divides S, else largest multiple-of-8 divisor <= 256, else S."""
    if S % 128 == 0:
        return 128
    best = S
    for ts in range(8, min(S, 256) + 1, 8):
        if S % ts == 0:
            best = ts
    return best


def cross_attention_block(seq, cond, params, num_heads, eps=1e-5):
    """seq: (N, S, D), cond: (N, T, D). Returns (N, S, D)."""
    N, S, D = seq.shape
    _, T, _ = cond.shape
    assert D % num_heads == 0, "embed_dim must be divisible by num_heads"
    hd = D // num_heads

    io_dtype = seq.dtype
    scale = 1.0 / math.sqrt(D / num_heads)

    # Pre-transpose weights (kernel computes x @ W^T + b) in the activation
    # dtype; fold the attention scale into the query projection (free).
    wq_t = (params["wq"].T * scale).astype(io_dtype)
    bq = (params["bq"] * scale).reshape(1, D).astype(jnp.float32)
    wk_t = params["wk"].T.astype(io_dtype)
    bk = params["bk"].reshape(1, D).astype(jnp.float32)
    wv_t = params["wv"].T.astype(io_dtype)
    bv = params["bv"].reshape(1, D).astype(jnp.float32)
    wh_t = params["wh"].T.astype(io_dtype)
    bh = params["bh"].reshape(1, D).astype(jnp.float32)
    gamma = params["gamma"].reshape(1, D).astype(jnp.float32)
    beta = params["beta"].reshape(1, D).astype(jnp.float32)

    TS = _pick_query_tile(S)
    grid = (N, S // TS)

    kernel = functools.partial(_cross_attn_kernel, num_heads=num_heads, eps=eps)

    rep2d = lambda shape: pl.BlockSpec(shape, lambda n, s: (0, 0))  # resident block

    return pl.pallas_call(
        kernel,
        out_shape=jax.ShapeDtypeStruct((N, S, D), io_dtype),
        grid_spec=pltpu.PrefetchScalarGridSpec(
            num_scalar_prefetch=0,
            grid=grid,
            in_specs=[
                pl.BlockSpec((1, TS, D), lambda n, s: (n, s, 0)),  # seq tile
                pl.BlockSpec((1, T, D), lambda n, s: (n, 0, 0)),   # cond (full T, per n)
                rep2d((D, D)), rep2d((1, D)),                      # Wq^T*scale, bq*scale
                rep2d((D, D)), rep2d((1, D)),                      # Wk^T, bk
                rep2d((D, D)), rep2d((1, D)),                      # Wv^T, bv
                rep2d((D, D)), rep2d((1, D)),                      # Wh^T, bh
                rep2d((1, D)), rep2d((1, D)),                      # gamma, beta
            ],
            out_specs=pl.BlockSpec((1, TS, D), lambda n, s: (n, s, 0)),
            scratch_shapes=[
                pltpu.VMEM((num_heads, T, hd), io_dtype),          # cached K (head-major)
                pltpu.VMEM((num_heads, T, hd), io_dtype),          # cached V (head-major)
            ],
        ),
        compiler_params=pltpu.CompilerParams(
            # query-tile axis must be sequential ("arbitrary") so the per-batch
            # K/V scratch computed at s == 0 is valid for s > 0.
            dimension_semantics=("parallel", "arbitrary"),
            vmem_limit_bytes=64 * 1024 * 1024,
        ),
    )(seq, cond, wq_t, bq, wk_t, bk, wv_t, bv, wh_t, bh, gamma, beta)


def init_params(key, embed_dim):
    """Deterministic init matching the parameter shapes of CrossAttentionBlock.__init__."""
    ks = jax.random.split(key, 8)
    bound = 1.0 / math.sqrt(embed_dim)
    u = lambda k, shape: jax.random.uniform(k, shape, jnp.float32, -bound, bound)
    return {
        "wq": u(ks[0], (embed_dim, embed_dim)), "bq": u(ks[1], (embed_dim,)),
        "wk": u(ks[2], (embed_dim, embed_dim)), "bk": u(ks[3], (embed_dim,)),
        "wv": u(ks[4], (embed_dim, embed_dim)), "bv": u(ks[5], (embed_dim,)),
        "wh": u(ks[6], (embed_dim, embed_dim)), "bh": u(ks[7], (embed_dim,)),
        "gamma": jnp.ones((embed_dim,), jnp.float32),
        "beta": jnp.zeros((embed_dim,), jnp.float32),
    }


def _reference(seq, cond, params, num_heads, eps=1e-5):
    """Pure-JAX reference matching the PyTorch forward (eval mode)."""
    N, S, D = seq.shape
    H = num_heads
    hd = D // H
    lin = lambda x, w, b: jnp.einsum("nsd,ed->nse", x, w) + b      # x @ W^T + b
    q = lin(seq, params["wq"], params["bq"]).reshape(N, S, H, hd).transpose(0, 2, 1, 3)
    k = lin(cond, params["wk"], params["bk"]).reshape(N, -1, H, hd).transpose(0, 2, 1, 3)
    v = lin(cond, params["wv"], params["bv"]).reshape(N, -1, H, hd).transpose(0, 2, 1, 3)
    s = jnp.einsum("nhqd,nhkd->nhqk", q, k) / math.sqrt(D / H)
    p = jax.nn.softmax(s, axis=-1)
    y = jnp.einsum("nhqk,nhkd->nhqd", p, v).transpose(0, 2, 1, 3).reshape(N, S, D)
    attn = jnp.einsum("nsd,ed->nse", y, params["wh"]) + params["bh"]
    x = attn + seq
    mean = x.mean(-1, keepdims=True)
    var = ((x - mean) ** 2).mean(-1, keepdims=True)
    xhat = (x - mean) / jnp.sqrt(var + eps)
    return xhat * params["gamma"] + params["beta"]


if __name__ == "__main__":
    N, S, T, D, H = 2, 8, 8, 32, 4   # batch, query len, kv len, embed dim, heads

    key = jax.random.PRNGKey(0)
    k_seq, k_cond, k_par = jax.random.split(key, 3)
    seq = jax.random.normal(k_seq, (N, S, D), jnp.float32)
    cond = jax.random.normal(k_cond, (N, T, D), jnp.float32)
    params = init_params(k_par, D)

    out = cross_attention_block(seq, cond, params, num_heads=H)
    out = jax.block_until_ready(out)
    assert out.shape == (N, S, D)

    with jax.default_matmul_precision("float32"):
        ref = _reference(seq, cond, params, num_heads=H)
    assert jnp.allclose(out, ref, atol=2e-2, rtol=2e-2), "kernel/reference mismatch"

    print("KERNEL_OK")
</pallas_src>

<mosaic_0001>
module attributes {stable_mosaic.version = 11 : i64} {
  func.func @_cross_attn_kernel(%arg0: i32, %arg1: i32, %arg2: memref<1x8x32xf32, #tpu.memory_space<vmem>>, %arg3: memref<1x8x32xf32, #tpu.memory_space<vmem>>, %arg4: memref<32x32xf32, #tpu.memory_space<vmem>>, %arg5: memref<1x32xf32, #tpu.memory_space<vmem>>, %arg6: memref<32x32xf32, #tpu.memory_space<vmem>>, %arg7: memref<1x32xf32, #tpu.memory_space<vmem>>, %arg8: memref<32x32xf32, #tpu.memory_space<vmem>>, %arg9: memref<1x32xf32, #tpu.memory_space<vmem>>, %arg10: memref<32x32xf32, #tpu.memory_space<vmem>>, %arg11: memref<1x32xf32, #tpu.memory_space<vmem>>, %arg12: memref<1x32xf32, #tpu.memory_space<vmem>>, %arg13: memref<1x32xf32, #tpu.memory_space<vmem>>, %arg14: memref<1x8x32xf32, #tpu.memory_space<vmem>>, %arg15: memref<4x8x8xf32, #tpu.memory_space<vmem>>, %arg16: memref<4x8x8xf32, #tpu.memory_space<vmem>>) attributes {dimension_semantics = [#tpu.dimension_semantics<parallel>, #tpu.dimension_semantics<arbitrary>], iteration_bounds = array<i64: 2, 1>, scalar_prefetch = 0 : i64, scratch_operands = 2 : i64, tpu.core_type = #tpu.core_type<tc>, window_params = [{transform_indices = @transform_0, window_bounds = array<i64: 1, 8, 32>}, {transform_indices = @transform_1, window_bounds = array<i64: 1, 8, 32>}, {pipeline_mode = #tpu.pipeline_mode<synchronous>, transform_indices = @transform_2, window_bounds = array<i64: 32, 32>}, {pipeline_mode = #tpu.pipeline_mode<synchronous>, transform_indices = @transform_3, window_bounds = array<i64: 1, 32>}, {pipeline_mode = #tpu.pipeline_mode<synchronous>, transform_indices = @transform_4, window_bounds = array<i64: 32, 32>}, {pipeline_mode = #tpu.pipeline_mode<synchronous>, transform_indices = @transform_5, window_bounds = array<i64: 1, 32>}, {pipeline_mode = #tpu.pipeline_mode<synchronous>, transform_indices = @transform_6, window_bounds = array<i64: 32, 32>}, {pipeline_mode = #tpu.pipeline_mode<synchronous>, transform_indices = @transform_7, window_bounds = array<i64: 1, 32>}, {pipeline_mode = #tpu.pipeline_mode<synchronous>, transform_indices = @transform_8, window_bounds = array<i64: 32, 32>}, {pipeline_mode = #tpu.pipeline_mode<synchronous>, transform_indices = @transform_9, window_bounds = array<i64: 1, 32>}, {pipeline_mode = #tpu.pipeline_mode<synchronous>, transform_indices = @transform_10, window_bounds = array<i64: 1, 32>}, {pipeline_mode = #tpu.pipeline_mode<synchronous>, transform_indices = @transform_11, window_bounds = array<i64: 1, 32>}, {transform_indices = @transform_12, window_bounds = array<i64: 1, 8, 32>}]} {
    %c0 = arith.constant 0 : index
    %c0_0 = arith.constant 0 : index
    %c0_1 = arith.constant 0 : index
    %0 = vector.load %arg2[%c0, %c0_0, %c0_1] : memref<1x8x32xf32, #tpu.memory_space<vmem>>, vector<1x8x32xf32>
    %1 = vector.shape_cast %0 : vector<1x8x32xf32> to vector<8x32xf32>
    %c0_i32 = arith.constant 0 : i32
    %2 = arith.cmpi eq, %arg1, %c0_i32 : i32
    %3 = arith.extui %2 : i1 to i32
    %c0_i32_2 = arith.constant 0 : i32
    %4 = arith.cmpi ne, %3, %c0_i32_2 : i32
    scf.if %4 {
      %c0_34 = arith.constant 0 : index
      %c0_35 = arith.constant 0 : index
      %c0_36 = arith.constant 0 : index
      %59 = vector.load %arg3[%c0_34, %c0_35, %c0_36] : memref<1x8x32xf32, #tpu.memory_space<vmem>>, vector<1x8x32xf32>
      %60 = vector.shape_cast %59 : vector<1x8x32xf32> to vector<8x32xf32>
      %c0_37 = arith.constant 0 : index
      %c0_38 = arith.constant 0 : index
      %61 = vector.load %arg6[%c0_37, %c0_38] : memref<32x32xf32, #tpu.memory_space<vmem>>, vector<32x32xf32>
      %cst_39 = arith.constant dense<0.000000e+00> : vector<8x32xf32>
      %62 = tpu.matmul %60, %61, %cst_39 {dimension_numbers = #tpu.dot_dimension_numbers<[1], [0], [0], [1], [0, 0, 1, 1], [], []>} : vector<8x32xf32>, vector<32x32xf32>, vector<8x32xf32> -> vector<8x32xf32>
      %c0_40 = arith.constant 0 : index
      %c0_41 = arith.constant 0 : index
      %63 = vector.load %arg7[%c0_40, %c0_41] : memref<1x32xf32, #tpu.memory_space<vmem>>, vector<1x32xf32>
      %64 = vector.broadcast %63 : vector<1x32xf32> to vector<8x32xf32>
      %65 = arith.addf %62, %64 : vector<8x32xf32>
      %c0_42 = arith.constant 0 : index
      %c0_43 = arith.constant 0 : index
      %66 = vector.load %arg8[%c0_42, %c0_43] : memref<32x32xf32, #tpu.memory_space<vmem>>, vector<32x32xf32>
      %cst_44 = arith.constant dense<0.000000e+00> : vector<8x32xf32>
      %67 = tpu.matmul %60, %66, %cst_44 {dimension_numbers = #tpu.dot_dimension_numbers<[1], [0], [0], [1], [0, 0, 1, 1], [], []>} : vector<8x32xf32>, vector<32x32xf32>, vector<8x32xf32> -> vector<8x32xf32>
      %c0_45 = arith.constant 0 : index
      %c0_46 = arith.constant 0 : index
      %68 = vector.load %arg9[%c0_45, %c0_46] : memref<1x32xf32, #tpu.memory_space<vmem>>, vector<1x32xf32>
      %69 = vector.broadcast %68 : vector<1x32xf32> to vector<8x32xf32>
      %70 = arith.addf %67, %69 : vector<8x32xf32>
      %71 = vector.shape_cast %65 : vector<8x32xf32> to vector<8x4x8xf32>
      %72 = tpu.transpose %71, [1, 0, 2] : vector<8x4x8xf32> -> vector<4x8x8xf32>
      %c0_47 = arith.constant 0 : index
      %c0_48 = arith.constant 0 : index
      %c0_49 = arith.constant 0 : index
      %73 = vector.load %arg15[%c0_47, %c0_48, %c0_49] : memref<4x8x8xf32, #tpu.memory_space<vmem>>, vector<4x8x8xf32>
      tpu.vector_store %arg15[%c0_47, %c0_48, %c0_49], %72 {strides = array<i32>} : memref<4x8x8xf32, #tpu.memory_space<vmem>>, vector<4x8x8xf32>,
      %74 = vector.shape_cast %70 : vector<8x32xf32> to vector<8x4x8xf32>
      %75 = tpu.transpose %74, [1, 0, 2] : vector<8x4x8xf32> -> vector<4x8x8xf32>
      %c0_50 = arith.constant 0 : index
      %c0_51 = arith.constant 0 : index
      %c0_52 = arith.constant 0 : index
      %76 = vector.load %arg16[%c0_50, %c0_51, %c0_52] : memref<4x8x8xf32, #tpu.memory_space<vmem>>, vector<4x8x8xf32>
      tpu.vector_store %arg16[%c0_50, %c0_51, %c0_52], %75 {strides = array<i32>} : memref<4x8x8xf32, #tpu.memory_space<vmem>>, vector<4x8x8xf32>,
    } else {
    }
    %c0_3 = arith.constant 0 : index
    %c0_4 = arith.constant 0 : index
    %5 = vector.load %arg4[%c0_3, %c0_4] : memref<32x32xf32, #tpu.memory_space<vmem>>, vector<32x32xf32>
    %cst = arith.constant dense<0.000000e+00> : vector<8x32xf32>
    %6 = tpu.matmul %1, %5, %cst {dimension_numbers = #tpu.dot_dimension_numbers<[1], [0], [0], [1], [0, 0, 1, 1], [], []>} : vector<8x32xf32>, vector<32x32xf32>, vector<8x32xf32> -> vector<8x32xf32>
    %c0_5 = arith.constant 0 : index
    %c0_6 = arith.constant 0 : index
    %7 = vector.load %arg5[%c0_5, %c0_6] : memref<1x32xf32, #tpu.memory_space<vmem>>, vector<1x32xf32>
    %8 = vector.broadcast %7 : vector<1x32xf32> to vector<8x32xf32>
    %9 = arith.addf %6, %8 : vector<8x32xf32>
    %10 = vector.shape_cast %9 : vector<8x32xf32> to vector<8x4x8xf32>
    %11 = tpu.transpose %10, [1, 0, 2] : vector<8x4x8xf32> -> vector<4x8x8xf32>
    %c0_7 = arith.constant 0 : index
    %c0_8 = arith.constant 0 : index
    %c0_9 = arith.constant 0 : index
    %12 = vector.load %arg15[%c0_7, %c0_8, %c0_9] : memref<4x8x8xf32, #tpu.memory_space<vmem>>, vector<4x8x8xf32>
    %c0_10 = arith.constant 0 : index
    %c0_11 = arith.constant 0 : index
    %c0_12 = arith.constant 0 : index
    %13 = vector.load %arg16[%c0_10, %c0_11, %c0_12] : memref<4x8x8xf32, #tpu.memory_space<vmem>>, vector<4x8x8xf32>
    "tpu.trace_start"() <{level = 10 : i32, message = "hqd,hkd->hqk"}> : () -> ()
    %cst_13 = arith.constant dense<0.000000e+00> : vector<4x8x8xf32>
    %14 = tpu.matmul %11, %12, %cst_13 {dimension_numbers = #tpu.dot_dimension_numbers<[2], [2], [1], [1], [0, 0, 0, 1, 1, 1], [0], [0]>} : vector<4x8x8xf32>, vector<4x8x8xf32>, vector<4x8x8xf32> -> vector<4x8x8xf32>
    "tpu.trace_stop"() : () -> ()
    %cst_14 = arith.constant dense<0xFF800000> : vector<4x8xf32>
    %15 = vector.multi_reduction <maximumf>, %14, %cst_14 [2] : vector<4x8x8xf32> to vector<4x8xf32>
    %16 = vector.shape_cast %15 : vector<4x8xf32> to vector<4x8x1xf32>
    %17 = vector.broadcast %16 : vector<4x8x1xf32> to vector<4x8x8xf32>
    %18 = arith.subf %14, %17 : vector<4x8x8xf32>
    %19 = math.exp %18 : vector<4x8x8xf32>
    %cst_15 = arith.constant dense<0.000000e+00> : vector<4x8xf32>
    %20 = vector.multi_reduction <add>, %19, %cst_15 [2] : vector<4x8x8xf32> to vector<4x8xf32>
    %21 = vector.shape_cast %20 : vector<4x8xf32> to vector<4x8x1xf32>
    "tpu.trace_start"() <{level = 10 : i32, message = "hqk,hkd->hqd"}> : () -> ()
    %cst_16 = arith.constant dense<0.000000e+00> : vector<4x8x8xf32>
    %22 = tpu.matmul %19, %13, %cst_16 {dimension_numbers = #tpu.dot_dimension_numbers<[2], [1], [1], [2], [0, 0, 0, 1, 1, 2], [0], [0]>} : vector<4x8x8xf32>, vector<4x8x8xf32>, vector<4x8x8xf32> -> vector<4x8x8xf32>
    "tpu.trace_stop"() : () -> ()
    %23 = tpu.reciprocal %21 {approx = true} : vector<4x8x1xf32> -> vector<4x8x1xf32>
    %24 = vector.broadcast %23 : vector<4x8x1xf32> to vector<4x8x8xf32>
    %25 = arith.mulf %22, %24 : vector<4x8x8xf32>
    %26 = tpu.transpose %25, [1, 0, 2] : vector<4x8x8xf32> -> vector<8x4x8xf32>
    %27 = vector.shape_cast %26 : vector<8x4x8xf32> to vector<8x32xf32>
    %c0_17 = arith.constant 0 : index
    %c0_18 = arith.constant 0 : index
    %28 = vector.load %arg10[%c0_17, %c0_18] : memref<32x32xf32, #tpu.memory_space<vmem>>, vector<32x32xf32>
    %cst_19 = arith.constant dense<0.000000e+00> : vector<8x32xf32>
    %29 = tpu.matmul %27, %28, %cst_19 {dimension_numbers = #tpu.dot_dimension_numbers<[1], [0], [0], [1], [0, 0, 1, 1], [], []>} : vector<8x32xf32>, vector<32x32xf32>, vector<8x32xf32> -> vector<8x32xf32>
    %c0_20 = arith.constant 0 : index
    %c0_21 = arith.constant 0 : index
    %30 = vector.load %arg11[%c0_20, %c0_21] : memref<1x32xf32, #tpu.memory_space<vmem>>, vector<1x32xf32>
    %31 = vector.broadcast %30 : vector<1x32xf32> to vector<8x32xf32>
    %32 = arith.addf %29, %31 : vector<8x32xf32>
    %33 = arith.addf %32, %1 : vector<8x32xf32>
    %cst_22 = arith.constant dense<0.000000e+00> : vector<8xf32>
    %34 = vector.multi_reduction <add>, %33, %cst_22 [1] : vector<8x32xf32> to vector<8xf32>
    %35 = vector.shape_cast %34 : vector<8xf32> to vector<8x1xf32>
    %cst_23 = arith.constant 3.200000e+01 : f32
    %36 = vector.broadcast %cst_23 : f32 to vector<8x1xf32>
    %37 = arith.divf %35, %36 : vector<8x1xf32>
    %38 = vector.broadcast %37 : vector<8x1xf32> to vector<8x32xf32>
    %39 = arith.subf %33, %38 : vector<8x32xf32>
    %40 = arith.mulf %39, %39 : vector<8x32xf32>
    %cst_24 = arith.constant dense<0.000000e+00> : vector<8xf32>
    %41 = vector.multi_reduction <add>, %40, %cst_24 [1] : vector<8x32xf32> to vector<8xf32>
    %42 = vector.shape_cast %41 : vector<8xf32> to vector<8x1xf32>
    %cst_25 = arith.constant 3.200000e+01 : f32
    %43 = vector.broadcast %cst_25 : f32 to vector<8x1xf32>
    %44 = arith.divf %42, %43 : vector<8x1xf32>
    %cst_26 = arith.constant 9.99999974E-6 : f32
    %45 = vector.broadcast %cst_26 : f32 to vector<8x1xf32>
    %46 = arith.addf %44, %45 : vector<8x1xf32>
    %47 = math.rsqrt %46 : vector<8x1xf32>
    %48 = vector.broadcast %47 : vector<8x1xf32> to vector<8x32xf32>
    %49 = arith.mulf %39, %48 : vector<8x32xf32>
    %c0_27 = arith.constant 0 : index
    %c0_28 = arith.constant 0 : index
    %50 = vector.load %arg12[%c0_27, %c0_28] : memref<1x32xf32, #tpu.memory_space<vmem>>, vector<1x32xf32>
    %51 = vector.broadcast %50 : vector<1x32xf32> to vector<8x32xf32>
    %52 = arith.mulf %49, %51 : vector<8x32xf32>
    %c0_29 = arith.constant 0 : index
    %c0_30 = arith.constant 0 : index
    %53 = vector.load %arg13[%c0_29, %c0_30] : memref<1x32xf32, #tpu.memory_space<vmem>>, vector<1x32xf32>
    %54 = vector.broadcast %53 : vector<1x32xf32> to vector<8x32xf32>
    %55 = arith.addf %52, %54 : vector<8x32xf32>
    %c0_31 = arith.constant 0 : index
    %c0_32 = arith.constant 0 : index
    %c0_33 = arith.constant 0 : index
    %56 = vector.load %arg14[%c0_31, %c0_32, %c0_33] : memref<1x8x32xf32, #tpu.memory_space<vmem>>, vector<1x8x32xf32>
    %57 = vector.shape_cast %56 : vector<1x8x32xf32> to vector<8x32xf32>
    %58 = vector.shape_cast %55 : vector<8x32xf32> to vector<1x8x32xf32>
    tpu.vector_store %arg14[%c0_31, %c0_32, %c0_33], %58 {strides = array<i32>} : memref<1x8x32xf32, #tpu.memory_space<vmem>>, vector<1x8x32xf32>,
    return
  }
  func.func @transform_0(%arg0: i32, %arg1: i32) -> (i32, i32, i32) {
    %c0_i32 = arith.constant 0 : i32
    %c0_i32_0 = arith.constant 0 : i32
    return %arg0, %arg1, %c0_i32 : i32, i32, i32
  }
  func.func @transform_1(%arg0: i32, %arg1: i32) -> (i32, i32, i32) {
    %c0_i32 = arith.constant 0 : i32
    %c0_i32_0 = arith.constant 0 : i32
    %c0_i32_1 = arith.constant 0 : i32
    return %arg0, %c0_i32, %c0_i32_0 : i32, i32, i32
  }
  func.func @transform_2(%arg0: i32, %arg1: i32) -> (i32, i32) {
    %c0_i32 = arith.constant 0 : i32
    %c0_i32_0 = arith.constant 0 : i32
    %c0_i32_1 = arith.constant 0 : i32
    return %c0_i32, %c0_i32_0 : i32, i32
  }
  func.func @transform_3(%arg0: i32, %arg1: i32) -> (i32, i32) {
    %c0_i32 = arith.constant 0 : i32
    %c0_i32_0 = arith.constant 0 : i32
    %c0_i32_1 = arith.constant 0 : i32
    return %c0_i32, %c0_i32_0 : i32, i32
  }
  func.func @transform_4(%arg0: i32, %arg1: i32) -> (i32, i32) {
    %c0_i32 = arith.constant 0 : i32
    %c0_i32_0 = arith.constant 0 : i32
    %c0_i32_1 = arith.constant 0 : i32
    return %c0_i32, %c0_i32_0 : i32, i32
  }
  func.func @transform_5(%arg0: i32, %arg1: i32) -> (i32, i32) {
    %c0_i32 = arith.constant 0 : i32
    %c0_i32_0 = arith.constant 0 : i32
    %c0_i32_1 = arith.constant 0 : i32
    return %c0_i32, %c0_i32_0 : i32, i32
  }
  func.func @transform_6(%arg0: i32, %arg1: i32) -> (i32, i32) {
    %c0_i32 = arith.constant 0 : i32
    %c0_i32_0 = arith.constant 0 : i32
    %c0_i32_1 = arith.constant 0 : i32
    return %c0_i32, %c0_i32_0 : i32, i32
  }
  func.func @transform_7(%arg0: i32, %arg1: i32) -> (i32, i32) {
    %c0_i32 = arith.constant 0 : i32
    %c0_i32_0 = arith.constant 0 : i32
    %c0_i32_1 = arith.constant 0 : i32
    return %c0_i32, %c0_i32_0 : i32, i32
  }
  func.func @transform_8(%arg0: i32, %arg1: i32) -> (i32, i32) {
    %c0_i32 = arith.constant 0 : i32
    %c0_i32_0 = arith.constant 0 : i32
    %c0_i32_1 = arith.constant 0 : i32
    return %c0_i32, %c0_i32_0 : i32, i32
  }
  func.func @transform_9(%arg0: i32, %arg1: i32) -> (i32, i32) {
    %c0_i32 = arith.constant 0 : i32
    %c0_i32_0 = arith.constant 0 : i32
    %c0_i32_1 = arith.constant 0 : i32
    return %c0_i32, %c0_i32_0 : i32, i32
  }
  func.func @transform_10(%arg0: i32, %arg1: i32) -> (i32, i32) {
    %c0_i32 = arith.constant 0 : i32
    %c0_i32_0 = arith.constant 0 : i32
    %c0_i32_1 = arith.constant 0 : i32
    return %c0_i32, %c0_i32_0 : i32, i32
  }
  func.func @transform_11(%arg0: i32, %arg1: i32) -> (i32, i32) {
    %c0_i32 = arith.constant 0 : i32
    %c0_i32_0 = arith.constant 0 : i32
    %c0_i32_1 = arith.constant 0 : i32
    return %c0_i32, %c0_i32_0 : i32, i32
  }
  func.func @transform_12(%arg0: i32, %arg1: i32) -> (i32, i32, i32) {
    %c0_i32 = arith.constant 0 : i32
    %c0_i32_0 = arith.constant 0 : i32
    return %arg0, %arg1, %c0_i32 : i32, i32, i32
  }
}

</mosaic_0001>

<llo_original>
// kernel: tpu_custom_call.1
$region0: #{tpu_custom_call.1}
  #allocation0 [shape = 'u32[]', space=smem, size = 0x4, offset = 0x4, fixed_abs, tag = 'smem constant byte address 0x4 - core index']
  #allocation1 [shape = 'u32[144,128]{1,0:T(1,128)}', space=vmem, size = 0x12000, scoped, tag = 'internal scratch']
  #allocation2 [shape = 'f32[4,8,8]{2,1,0:T(8,128)}', space=vmem, size = 0x4000, scoped, tag = 'scratch operand']
  #allocation3 [shape = 'f32[4,8,8]{2,1,0:T(8,128)}', space=vmem, size = 0x4000, scoped, tag = 'scratch operand']
  %s0 = inlined_call_operand.hbm [shape: f32[2,8,32], index: 0, kind: input, shape index: {}]
  %s1 = inlined_call_operand.hbm [shape: f32[2,8,32], index: 1, kind: input, shape index: {}]
  %s2 = inlined_call_operand.hbm [shape: f32[32,32], index: 2, kind: input, shape index: {}]
  %s3 = inlined_call_operand.hbm [shape: f32[1,32], index: 3, kind: input, shape index: {}]
  %s4 = inlined_call_operand.hbm [shape: f32[32,32], index: 4, kind: input, shape index: {}]
  %s5 = inlined_call_operand.hbm [shape: f32[1,32], index: 5, kind: input, shape index: {}]
  %s6 = inlined_call_operand.hbm [shape: f32[32,32], index: 6, kind: input, shape index: {}]
  %s7 = inlined_call_operand.hbm [shape: f32[1,32], index: 7, kind: input, shape index: {}]
  %s8 = inlined_call_operand.hbm [shape: f32[32,32], index: 8, kind: input, shape index: {}]
  %s9 = inlined_call_operand.hbm [shape: f32[1,32], index: 9, kind: input, shape index: {}]
  %s10 = inlined_call_operand.hbm [shape: f32[1,32], index: 10, kind: input, shape index: {}]
  %s11 = inlined_call_operand.hbm [shape: f32[1,32], index: 11, kind: input, shape index: {}]
  %s12 = inlined_call_operand.hbm [shape: f32[2,8,32], index: 12, kind: output, shape index: {}]
  %s13 = sld [smem:[#allocation0]]
  $region133: #{tpu_custom_call.1} parent=0
    _
  %s15 = ssub.s32 1, %s13
  %s16 = scalar_select 0, %s15, %s13
  $region1: #{tpu_custom_call.1} parent=0
    #allocation4 [shape = 'u8[8192]{0}', space=vmem, size = 0x2000, scoped, tag = 'input window, operand 0']
    #allocation5 [shape = 's32[2]{0}', space=sflag, size = 0x8, scoped, tag = 'scoped memory for tpu_custom_call.1']
    #allocation6 [shape = 's32[2]{0}', space=sflag, size = 0x8, scoped, tag = 'scoped memory for tpu_custom_call.1']
    #allocation7 [shape = 'u8[8192]{0}', space=vmem, size = 0x2000, scoped, tag = 'input window, operand 1']
    #allocation8 [shape = 's32[2]{0}', space=sflag, size = 0x8, scoped, tag = 'scoped memory for tpu_custom_call.1']
    #allocation9 [shape = 'u8[16384]{0}', space=vmem, size = 0x4000, scoped, tag = 'input window, operand 2, single buffered']
    #allocation10 [shape = 'u8[512]{0}', space=vmem, size = 0x400, scoped, tag = 'input window, operand 3, single buffered']
    #allocation11 [shape = 's32[1]{0}', space=sflag, size = 0x4, scoped, tag = 'scoped memory for tpu_custom_call.1']
    #allocation12 [shape = 'u8[16384]{0}', space=vmem, size = 0x4000, scoped, tag = 'input window, operand 4, single buffered']
    #allocation13 [shape = 'u8[512]{0}', space=vmem, size = 0x400, scoped, tag = 'input window, operand 5, single buffered']
    #allocation14 [shape = 's32[1]{0}', space=sflag, size = 0x4, scoped, tag = 'scoped memory for tpu_custom_call.1']
    #allocation15 [shape = 'u8[16384]{0}', space=vmem, size = 0x4000, scoped, tag = 'input window, operand 6, single buffered']
    #allocation16 [shape = 'u8[512]{0}', space=vmem, size = 0x400, scoped, tag = 'input window, operand 7, single buffered']
    #allocation17 [shape = 's32[1]{0}', space=sflag, size = 0x4, scoped, tag = 'scoped memory for tpu_custom_call.1']
    #allocation18 [shape = 'u8[16384]{0}', space=vmem, size = 0x4000, scoped, tag = 'input window, operand 8, single buffered']
    #allocation19 [shape = 'u8[512]{0}', space=vmem, size = 0x400, scoped, tag = 'input window, operand 9, single buffered']
    #allocation20 [shape = 's32[1]{0}', space=sflag, size = 0x4, scoped, tag = 'scoped memory for tpu_custom_call.1']
    #allocation21 [shape = 'u8[512]{0}', space=vmem, size = 0x400, scoped, tag = 'input window, operand 10, single buffered']
    #allocation22 [shape = 'u8[512]{0}', space=vmem, size = 0x400, scoped, tag = 'input window, operand 11, single buffered']
    #allocation23 [shape = 's32[1]{0}', space=sflag, size = 0x4, scoped, tag = 'scoped memory for tpu_custom_call.1']
    #allocation24 [shape = 'u8[8192]{0}', space=vmem, size = 0x2000, scoped, tag = 'output window, operand 0']
    %17 = vsyncpa [#allocation5], 0
    %s18 = scalar_lea.sflag [#allocation5], 1
    %19 = vsyncpa %s18, 0
    %20 = vsyncpa [#allocation8], 0
    %s21 = scalar_lea.sflag [#allocation8], 1
    %22 = vsyncpa %s21, 0
    %23 = vsyncpa [#allocation11], 0
    %24 = vsyncpa [#allocation14], 0
    %25 = vsyncpa [#allocation17], 0
    %26 = vsyncpa [#allocation20], 0
    %27 = vsyncpa [#allocation23], 0
    %28 = vsyncpa [#allocation6], 0
    %s29 = scalar_lea.sflag [#allocation6], 1
    %30 = vsyncpa %s29, 0
    loop: start=0, step=1, limit=4
    $region2: #{tpu_custom_call.1} parent=1 // loop_pre_header
      _
    $region3: #{tpu_custom_call.1} parent=1 // loop_header
      %s32 = sphi 0, %s36
      %p33 = scmp.ge.s32.totalorder %s32, 4
      %s39 = sphi 0, %s51
      %s40 = sphi 0, %s47
      %s41 = sphi 0, %s39
      %s42 = sphi 0, %s40
      %s43 = sphi 0, %s41
      %s44 = sphi 0, %s42
      %s56 = sphi 0, %s58
      %s59 = sphi 0, %s56
      %s60 = sphi 0, %s59
      %s76 = sphi 0, %s60
      %s82 = sphi 0, %s84
      %s85 = sphi 0, %s82
      %s86 = sphi 0, %s85
      %s102 = sphi 0, %s86
      %s106 = sphi 0, %s106
      %s108 = sphi 0, %s106
      %s109 = sphi 0, %s108
      %s123 = sphi 0, %s109
      %s127 = sphi 0, %s127
      %s129 = sphi 0, %s127
      %s130 = sphi 0, %s129
      %s144 = sphi 0, %s130
      %s148 = sphi 0, %s148
      %s150 = sphi 0, %s148
      %s151 = sphi 0, %s150
      %s165 = sphi 0, %s151
      %s169 = sphi 0, %s169
      %s171 = sphi 0, %s169
      %s172 = sphi 0, %s171
      %s186 = sphi 0, %s172
      %s190 = sphi 0, %s190
      %s192 = sphi 0, %s190
      %s193 = sphi 0, %s192
      %s207 = sphi 0, %s193
      %s211 = sphi 0, %s211
      %s213 = sphi 0, %s211
      %s214 = sphi 0, %s213
      %s228 = sphi 0, %s214
      %s232 = sphi 0, %s232
      %s234 = sphi 0, %s232
      %s235 = sphi 0, %s234
      %s249 = sphi 0, %s235
      %s253 = sphi 0, %s253
      %s255 = sphi 0, %s253
      %s256 = sphi 0, %s255
      %s270 = sphi 0, %s256
      %s274 = sphi 0, %s274
      %s276 = sphi 0, %s274
      %s277 = sphi 0, %s276
      %s291 = sphi 0, %s277
      %s295 = sphi 0, %s295
      %s297 = sphi 0, %s295
      %s298 = sphi 0, %s297
      %s312 = sphi 0, %s298
      %s320 = sphi 0, %s322
      %s323 = sphi 0, %s320
      %s324 = sphi 0, %s323
      %s340 = sphi 0, %s324
    $region4: #{tpu_custom_call.1} parent=1 // loop_header_branch
      %35 = sbr.rel (%p33) target = $region8
    $region5: #{tpu_custom_call.1} parent=1 // loop_body
      %s37 = ssub.s32 %s32, 1
      %s38 = ssub.s32 %s32, 2
      %s45 = sadd.s32 1, %s40
      %p46 = scmp.ge.s32.totalorder %s45, 1
      %s47 = scalar_select %p46, 0, %s45
      %s48 = sadd.s32 1, %s39
      %s49 = scalar_select %p46, %s48, %s39
      %p50 = scmp.ge.s32.totalorder %s49, 2
      %s51 = scalar_select %p50, 0, %s49
      %s52 = ssub.s32 %s39, %s51
      %s53 = ssub.s32 %s40, %s47
      %s54 = sor.u32 %s52, %s53
      %p55 = scmp.eq.s32.totalorder %s54, 0
      %s57 = sadd.s32 %s56, 1
      %s58 = scalar_select %p55, %s56, %s57
      %p61 = pneg %p55
      %p62 = scmp.eq.s32.totalorder %s32, 1
      %p63 = por %p61, %p62
      %p64 = scmp.ne.s32.totalorder %s56, %s59
      %p65 = scmp.eq.s32.totalorder %s32, 0
      %p66 = por %p64, %p65
      %p67 = scmp.ne.s32.totalorder %s56, %s59
      %p68 = scmp.eq.s32.totalorder %s37, 1
      %p69 = por %p67, %p68
      %p70 = scmp.ne.s32.totalorder %s59, %s60
      %p71 = scmp.eq.s32.totalorder %s37, 0
      %p72 = por %p70, %p71
      %p73 = scmp.ne.s32.totalorder %s59, %s60
      %p74 = scmp.eq.s32.totalorder %s38, 1
      %p75 = por %p73, %p74
      %p77 = scmp.ne.s32.totalorder %s60, %s76
      %p78 = scmp.eq.s32.totalorder %s38, 0
      %p79 = por %p77, %p78
      %s80 = ssub.s32 %s39, %s51
      %p81 = scmp.eq.s32.totalorder %s80, 0
      %s83 = sadd.s32 %s82, 1
      %s84 = scalar_select %p81, %s82, %s83
      %p87 = pneg %p81
      %p88 = scmp.eq.s32.totalorder %s32, 1
      %p89 = por %p87, %p88
      %p90 = scmp.ne.s32.totalorder %s82, %s85
      %p91 = scmp.eq.s32.totalorder %s32, 0
      %p92 = por %p90, %p91
      %p93 = scmp.ne.s32.totalorder %s82, %s85
      %p94 = scmp.eq.s32.totalorder %s37, 1
      %p95 = por %p93, %p94
      %p96 = scmp.ne.s32.totalorder %s85, %s86
      %p97 = scmp.eq.s32.totalorder %s37, 0
      %p98 = por %p96, %p97
      %p99 = scmp.ne.s32.totalorder %s85, %s86
      %p100 = scmp.eq.s32.totalorder %s38, 1
      %p101 = por %p99, %p100
      %p103 = scmp.ne.s32.totalorder %s86, %s102
      %p104 = scmp.eq.s32.totalorder %s38, 0
      %p105 = por %p103, %p104
      %s107 = sadd.s32 %s106, 1
      %p110 = scmp.eq.s32.totalorder %s32, 1
      %p111 = scmp.ne.s32.totalorder %s106, %s108
      %p112 = scmp.eq.s32.totalorder %s32, 0
      %p113 = por %p111, %p112
      %p114 = scmp.ne.s32.totalorder %s106, %s108
      %p115 = scmp.eq.s32.totalorder %s37, 1
      %p116 = por %p114, %p115
      %p117 = scmp.ne.s32.totalorder %s108, %s109
      %p118 = scmp.eq.s32.totalorder %s37, 0
      %p119 = por %p117, %p118
      %p120 = scmp.ne.s32.totalorder %s108, %s109
      %p121 = scmp.eq.s32.totalorder %s38, 1
      %p122 = por %p120, %p121
      %p124 = scmp.ne.s32.totalorder %s109, %s123
      %p125 = scmp.eq.s32.totalorder %s38, 0
      %p126 = por %p124, %p125
      %s128 = sadd.s32 %s127, 1
      %p131 = scmp.eq.s32.totalorder %s32, 1
      %p132 = scmp.ne.s32.totalorder %s127, %s129
      %p133 = scmp.eq.s32.totalorder %s32, 0
      %p134 = por %p132, %p133
      %p135 = scmp.ne.s32.totalorder %s127, %s129
      %p136 = scmp.eq.s32.totalorder %s37, 1
      %p137 = por %p135, %p136
      %p138 = scmp.ne.s32.totalorder %s129, %s130
      %p139 = scmp.eq.s32.totalorder %s37, 0
      %p140 = por %p138, %p139
      %p141 = scmp.ne.s32.totalorder %s129, %s130
      %p142 = scmp.eq.s32.totalorder %s38, 1
      %p143 = por %p141, %p142
      %p145 = scmp.ne.s32.totalorder %s130, %s144
      %p146 = scmp.eq.s32.totalorder %s38, 0
      %p147 = por %p145, %p146
      %s149 = sadd.s32 %s148, 1
      %p152 = scmp.eq.s32.totalorder %s32, 1
      %p153 = scmp.ne.s32.totalorder %s148, %s150
      %p154 = scmp.eq.s32.totalorder %s32, 0
      %p155 = por %p153, %p154
      %p156 = scmp.ne.s32.totalorder %s148, %s150
      %p157 = scmp.eq.s32.totalorder %s37, 1
      %p158 = por %p156, %p157
      %p159 = scmp.ne.s32.totalorder %s150, %s151
      %p160 = scmp.eq.s32.totalorder %s37, 0
      %p161 = por %p159, %p160
      %p162 = scmp.ne.s32.totalorder %s150, %s151
      %p163 = scmp.eq.s32.totalorder %s38, 1
      %p164 = por %p162, %p163
      %p166 = scmp.ne.s32.totalorder %s151, %s165
      %p167 = scmp.eq.s32.totalorder %s38, 0
      %p168 = por %p166, %p167
      %s170 = sadd.s32 %s169, 1
      %p173 = scmp.eq.s32.totalorder %s32, 1
      %p174 = scmp.ne.s32.totalorder %s169, %s171
      %p175 = scmp.eq.s32.totalorder %s32, 0
      %p176 = por %p174, %p175
      %p177 = scmp.ne.s32.totalorder %s169, %s171
      %p178 = scmp.eq.s32.totalorder %s37, 1
      %p179 = por %p177, %p178
      %p180 = scmp.ne.s32.totalorder %s171, %s172
      %p181 = scmp.eq.s32.totalorder %s37, 0
      %p182 = por %p180, %p181
      %p183 = scmp.ne.s32.totalorder %s171, %s172
      %p184 = scmp.eq.s32.totalorder %s38, 1
      %p185 = por %p183, %p184
      %p187 = scmp.ne.s32.totalorder %s172, %s186
      %p188 = scmp.eq.s32.totalorder %s38, 0
      %p189 = por %p187, %p188
      %s191 = sadd.s32 %s190, 1
      %p194 = scmp.eq.s32.totalorder %s32, 1
      %p195 = scmp.ne.s32.totalorder %s190, %s192
      %p196 = scmp.eq.s32.totalorder %s32, 0
      %p197 = por %p195, %p196
      %p198 = scmp.ne.s32.totalorder %s190, %s192
      %p199 = scmp.eq.s32.totalorder %s37, 1
      %p200 = por %p198, %p199
      %p201 = scmp.ne.s32.totalorder %s192, %s193
      %p202 = scmp.eq.s32.totalorder %s37, 0
      %p203 = por %p201, %p202
      %p204 = scmp.ne.s32.totalorder %s192, %s193
      %p205 = scmp.eq.s32.totalorder %s38, 1
      %p206 = por %p204, %p205
      %p208 = scmp.ne.s32.totalorder %s193, %s207
      %p209 = scmp.eq.s32.totalorder %s38, 0
      %p210 = por %p208, %p209
      %s212 = sadd.s32 %s211, 1
      %p215 = scmp.eq.s32.totalorder %s32, 1
      %p216 = scmp.ne.s32.totalorder %s211, %s213
      %p217 = scmp.eq.s32.totalorder %s32, 0
      %p218 = por %p216, %p217
      %p219 = scmp.ne.s32.totalorder %s211, %s213
      %p220 = scmp.eq.s32.totalorder %s37, 1
      %p221 = por %p219, %p220
      %p222 = scmp.ne.s32.totalorder %s213, %s214
      %p223 = scmp.eq.s32.totalorder %s37, 0
      %p224 = por %p222, %p223
      %p225 = scmp.ne.s32.totalorder %s213, %s214
      %p226 = scmp.eq.s32.totalorder %s38, 1
      %p227 = por %p225, %p226
      %p229 = scmp.ne.s32.totalorder %s214, %s228
      %p230 = scmp.eq.s32.totalorder %s38, 0
      %p231 = por %p229, %p230
      %s233 = sadd.s32 %s232, 1
      %p236 = scmp.eq.s32.totalorder %s32, 1
      %p237 = scmp.ne.s32.totalorder %s232, %s234
      %p238 = scmp.eq.s32.totalorder %s32, 0
      %p239 = por %p237, %p238
      %p240 = scmp.ne.s32.totalorder %s232, %s234
      %p241 = scmp.eq.s32.totalorder %s37, 1
      %p242 = por %p240, %p241
      %p243 = scmp.ne.s32.totalorder %s234, %s235
      %p244 = scmp.eq.s32.totalorder %s37, 0
      %p245 = por %p243, %p244
      %p246 = scmp.ne.s32.totalorder %s234, %s235
      %p247 = scmp.eq.s32.totalorder %s38, 1
      %p248 = por %p246, %p247
      %p250 = scmp.ne.s32.totalorder %s235, %s249
      %p251 = scmp.eq.s32.totalorder %s38, 0
      %p252 = por %p250, %p251
      %s254 = sadd.s32 %s253, 1
      %p257 = scmp.eq.s32.totalorder %s32, 1
      %p258 = scmp.ne.s32.totalorder %s253, %s255
      %p259 = scmp.eq.s32.totalorder %s32, 0
      %p260 = por %p258, %p259
      %p261 = scmp.ne.s32.totalorder %s253, %s255
      %p262 = scmp.eq.s32.totalorder %s37, 1
      %p263 = por %p261, %p262
      %p264 = scmp.ne.s32.totalorder %s255, %s256
      %p265 = scmp.eq.s32.totalorder %s37, 0
      %p266 = por %p264, %p265
      %p267 = scmp.ne.s32.totalorder %s255, %s256
      %p268 = scmp.eq.s32.totalorder %s38, 1
      %p269 = por %p267, %p268
      %p271 = scmp.ne.s32.totalorder %s256, %s270
      %p272 = scmp.eq.s32.totalorder %s38, 0
      %p273 = por %p271, %p272
      %s275 = sadd.s32 %s274, 1
      %p278 = scmp.eq.s32.totalorder %s32, 1
      %p279 = scmp.ne.s32.totalorder %s274, %s276
      %p280 = scmp.eq.s32.totalorder %s32, 0
      %p281 = por %p279, %p280
      %p282 = scmp.ne.s32.totalorder %s274, %s276
      %p283 = scmp.eq.s32.totalorder %s37, 1
      %p284 = por %p282, %p283
      %p285 = scmp.ne.s32.totalorder %s276, %s277
      %p286 = scmp.eq.s32.totalorder %s37, 0
      %p287 = por %p285, %p286
      %p288 = scmp.ne.s32.totalorder %s276, %s277
      %p289 = scmp.eq.s32.totalorder %s38, 1
      %p290 = por %p288, %p289
      %p292 = scmp.ne.s32.totalorder %s277, %s291
      %p293 = scmp.eq.s32.totalorder %s38, 0
      %p294 = por %p292, %p293
      %s296 = sadd.s32 %s295, 1
      %p299 = scmp.eq.s32.totalorder %s32, 1
      %p300 = scmp.ne.s32.totalorder %s295, %s297
      %p301 = scmp.eq.s32.totalorder %s32, 0
      %p302 = por %p300, %p301
      %p303 = scmp.ne.s32.totalorder %s295, %s297
      %p304 = scmp.eq.s32.totalorder %s37, 1
      %p305 = por %p303, %p304
      %p306 = scmp.ne.s32.totalorder %s297, %s298
      %p307 = scmp.eq.s32.totalorder %s37, 0
      %p308 = por %p306, %p307
      %p309 = scmp.ne.s32.totalorder %s297, %s298
      %p310 = scmp.eq.s32.totalorder %s38, 1
      %p311 = por %p309, %p310
      %p313 = scmp.ne.s32.totalorder %s298, %s312
      %p314 = scmp.eq.s32.totalorder %s38, 0
      %p315 = por %p313, %p314
      %s316 = ssub.s32 %s39, %s51
      %s317 = ssub.s32 %s40, %s47
      %s318 = sor.u32 %s316, %s317
      %p319 = scmp.eq.s32.totalorder %s318, 0
      %s321 = sadd.s32 %s320, 1
      %s322 = scalar_select %p319, %s320, %s321
      %p325 = pneg %p319
      %p326 = scmp.eq.s32.totalorder %s32, 1
      %p327 = por %p325, %p326
      %p328 = scmp.ne.s32.totalorder %s320, %s323
      %p329 = scmp.eq.s32.totalorder %s32, 0
      %p330 = por %p328, %p329
      %p331 = scmp.ne.s32.totalorder %s320, %s323
      %p332 = scmp.eq.s32.totalorder %s37, 1
      %p333 = por %p331, %p332
      %p334 = scmp.ne.s32.totalorder %s323, %s324
      %p335 = scmp.eq.s32.totalorder %s37, 0
      %p336 = por %p334, %p335
      %p337 = scmp.ne.s32.totalorder %s323, %s324
      %p338 = scmp.eq.s32.totalorder %s38, 1
      %p339 = por %p337, %p338
      %p341 = scmp.ne.s32.totalorder %s324, %s340
      %p342 = scmp.eq.s32.totalorder %s38, 0
      %p343 = por %p341, %p342
      %p344 = scmp.le.s32.totalorder 1, %s32
      %p345 = scmp.lt.s32.totalorder %s32, 3
      %p346 = pnand %p344, %p345
      %p347 = pneg %p346
      // Predicated region
      $region9: #{tpu_custom_call.1} parent=5 // pred_check
        _
      $region10: #{tpu_custom_call.1} parent=5 // pred_check_branch
        %349 = sbr.rel (%p346) target = $region12
      $region11: #{tpu_custom_call.1} parent=5 // pred_region
        %s350 = ssub.s32 %s32, 1
        // Predicated region
        $region13: #{tpu_custom_call.1} parent=11 // pred_check
          %p351 = pneg %p119
        $region14: #{tpu_custom_call.1} parent=11 // pred_check_branch
          %353 = sbr.rel (%p351) target = $region16
        $region15: #{tpu_custom_call.1} parent=11 // pred_region
          %s355 = ssub.s32 512, 512
          %356 = vsyncadd [#allocation8], %s355
          %s357 = sshll.u32 [#allocation9], 4
          %s358 = int_to_ptr.vmem [resolvable:$true] %s357
          %363 = dma.hbm_to_vmem [thread:$0]  %s2, 512, %s358, [#allocation8], 128, 128, 8
        $region16: #{tpu_custom_call.1} parent=11 // pred_fallthru
          _
        // Predicated region
        $region17: #{tpu_custom_call.1} parent=11 // pred_check
          %p364 = pneg %p140
        $region18: #{tpu_custom_call.1} parent=11 // pred_check_branch
          %366 = sbr.rel (%p364) target = $region20
        $region19: #{tpu_custom_call.1} parent=11 // pred_region
          %s368 = ssub.s32 16, 16
          %369 = vsyncadd [#allocation11], %s368
          %s371 = sshll.u32 [#allocation10], 4
          %s372 = int_to_ptr.vmem [resolvable:$true] %s371
          %374 = dma.hbm_to_vmem [thread:$0]  %s3, 16, %s372, [#allocation11]
        $region20: #{tpu_custom_call.1} parent=11 // pred_fallthru
          _
        // Predicated region
        $region21: #{tpu_custom_call.1} parent=11 // pred_check
          %p375 = pneg %p161
        $region22: #{tpu_custom_call.1} parent=11 // pred_check_branch
          %377 = sbr.rel (%p375) target = $region24
        $region23: #{tpu_custom_call.1} parent=11 // pred_region
          %s379 = ssub.s32 512, 512
          %380 = vsyncadd [#allocation11], %s379
          %s381 = sshll.u32 [#allocation12], 4
          %s382 = int_to_ptr.vmem [resolvable:$true] %s381
          %387 = dma.hbm_to_vmem [thread:$0]  %s4, 512, %s382, [#allocation11], 128, 128, 8
        $region24: #{tpu_custom_call.1} parent=11 // pred_fallthru
          _
        // Predicated region
        $region25: #{tpu_custom_call.1} parent=11 // pred_check
          %p388 = pneg %p182
        $region26: #{tpu_custom_call.1} parent=11 // pred_check_branch
          %390 = sbr.rel (%p388) target = $region28
        $region27: #{tpu_custom_call.1} parent=11 // pred_region
          %s392 = ssub.s32 16, 16
          %393 = vsyncadd [#allocation14], %s392
          %s395 = sshll.u32 [#allocation13], 4
          %s396 = int_to_ptr.vmem [resolvable:$true] %s395
          %398 = dma.hbm_to_vmem [thread:$0]  %s5, 16, %s396, [#allocation14]
        $region28: #{tpu_custom_call.1} parent=11 // pred_fallthru
          _
        // Predicated region
        $region29: #{tpu_custom_call.1} parent=11 // pred_check
          %p399 = pneg %p203
        $region30: #{tpu_custom_call.1} parent=11 // pred_check_branch
          %401 = sbr.rel (%p399) target = $region32
        $region31: #{tpu_custom_call.1} parent=11 // pred_region
          %s403 = ssub.s32 512, 512
          %404 = vsyncadd [#allocation14], %s403
          %s405 = sshll.u32 [#allocation15], 4
          %s406 = int_to_ptr.vmem [resolvable:$true] %s405
          %411 = dma.hbm_to_vmem [thread:$0]  %s6, 512, %s406, [#allocation14], 128, 128, 8
        $region32: #{tpu_custom_call.1} parent=11 // pred_fallthru
          _
        // Predicated region
        $region33: #{tpu_custom_call.1} parent=11 // pred_check
          %p412 = pneg %p224
        $region34: #{tpu_custom_call.1} parent=11 // pred_check_branch
          %414 = sbr.rel (%p412) target = $region36
        $region35: #{tpu_custom_call.1} parent=11 // pred_region
          %s416 = ssub.s32 16, 16
          %417 = vsyncadd [#allocation17], %s416
          %s419 = sshll.u32 [#allocation16], 4
          %s420 = int_to_ptr.vmem [resolvable:$true] %s419
          %422 = dma.hbm_to_vmem [thread:$0]  %s7, 16, %s420, [#allocation17]
        $region36: #{tpu_custom_call.1} parent=11 // pred_fallthru
          _
        // Predicated region
        $region37: #{tpu_custom_call.1} parent=11 // pred_check
          %p423 = pneg %p245
        $region38: #{tpu_custom_call.1} parent=11 // pred_check_branch
          %425 = sbr.rel (%p423) target = $region40
        $region39: #{tpu_custom_call.1} parent=11 // pred_region
          %s427 = ssub.s32 512, 512
          %428 = vsyncadd [#allocation17], %s427
          %s429 = sshll.u32 [#allocation18], 4
          %s430 = int_to_ptr.vmem [resolvable:$true] %s429
          %435 = dma.hbm_to_vmem [thread:$0]  %s8, 512, %s430, [#allocation17], 128, 128, 8
        $region40: #{tpu_custom_call.1} parent=11 // pred_fallthru
          _
        // Predicated region
        $region41: #{tpu_custom_call.1} parent=11 // pred_check
          %p436 = pneg %p266
        $region42: #{tpu_custom_call.1} parent=11 // pred_check_branch
          %438 = sbr.rel (%p436) target = $region44
        $region43: #{tpu_custom_call.1} parent=11 // pred_region
          %s440 = ssub.s32 16, 16
          %441 = vsyncadd [#allocation20], %s440
          %s443 = sshll.u32 [#allocation19], 4
          %s444 = int_to_ptr.vmem [resolvable:$true] %s443
          %446 = dma.hbm_to_vmem [thread:$0]  %s9, 16, %s444, [#allocation20]
        $region44: #{tpu_custom_call.1} parent=11 // pred_fallthru
          _
        // Predicated region
        $region45: #{tpu_custom_call.1} parent=11 // pred_check
          %p447 = pneg %p287
        $region46: #{tpu_custom_call.1} parent=11 // pred_check_branch
          %449 = sbr.rel (%p447) target = $region48
        $region47: #{tpu_custom_call.1} parent=11 // pred_region
          %s451 = ssub.s32 16, 16
          %452 = vsyncadd [#allocation20], %s451
          %s454 = sshll.u32 [#allocation21], 4
          %s455 = int_to_ptr.vmem [resolvable:$true] %s454
          %457 = dma.hbm_to_vmem [thread:$0]  %s10, 16, %s455, [#allocation20]
        $region48: #{tpu_custom_call.1} parent=11 // pred_fallthru
          _
        // Predicated region
        $region49: #{tpu_custom_call.1} parent=11 // pred_check
          %p458 = pneg %p308
        $region50: #{tpu_custom_call.1} parent=11 // pred_check_branch
          %460 = sbr.rel (%p458) target = $region52
        $region51: #{tpu_custom_call.1} parent=11 // pred_region
          %s462 = ssub.s32 16, 16
          %463 = vsyncadd [#allocation23], %s462
          %s465 = sshll.u32 [#allocation22], 4
          %s466 = int_to_ptr.vmem [resolvable:$true] %s465
          %468 = dma.hbm_to_vmem [thread:$0]  %s11, 16, %s466, [#allocation23]
        $region52: #{tpu_custom_call.1} parent=11 // pred_fallthru
          _
      $region12: #{tpu_custom_call.1} parent=5 // pred_fallthru
        _
      %p469 = scmp.lt.s32.totalorder %s32, 2
      // Predicated region
      $region53: #{tpu_custom_call.1} parent=5 // pred_check
        %p470 = pneg %p469
      $region54: #{tpu_custom_call.1} parent=5 // pred_check_branch
        %472 = sbr.rel (%p470) target = $region56
      $region55: #{tpu_custom_call.1} parent=5 // pred_region
        // Predicated region
        $region57: #{tpu_custom_call.1} parent=55 // pred_check
          %p473 = pneg %p66
        $region58: #{tpu_custom_call.1} parent=55 // pred_check_branch
          %475 = sbr.rel (%p473) target = $region60
        $region59: #{tpu_custom_call.1} parent=55 // pred_region
          %s476 = sand.u32 %s56, 1
          %s477 = scalar_lea.sflag [#allocation5], %s476
          %s478 = sand.u32 %s56, 1
          %s479 = smul.addr %s478, 8
          %s480 = scalar_lea.vmem [#allocation4], %s479
          %s482 = ssub.s32 128, 128
          %483 = vsyncadd %s477, %s482
          %s484 = sadd.s32 %s40, %s39
          %s485 = smul.addr %s484, 128
          %s486 = scalar_lea.hbm %s0, %s485
          %s488 = sshll.u32 %s480, 4
          %s489 = int_to_ptr.vmem [resolvable:$true] %s488
          %491 = dma.hbm_to_vmem [thread:$0]  %s486, 128, %s489, %s477
        $region60: #{tpu_custom_call.1} parent=55 // pred_fallthru
          _
        // Predicated region
        $region61: #{tpu_custom_call.1} parent=55 // pred_check
          %p492 = pneg %p92
        $region62: #{tpu_custom_call.1} parent=55 // pred_check_branch
          %494 = sbr.rel (%p492) target = $region64
        $region63: #{tpu_custom_call.1} parent=55 // pred_region
          %s495 = sand.u32 %s32, 1
          %s496 = scalar_lea.sflag [#allocation8], %s495
          %s497 = sand.u32 %s82, 1
          %s498 = smul.addr %s497, 8
          %s499 = scalar_lea.vmem [#allocation7], %s498
          %s501 = ssub.s32 128, 128
          %502 = vsyncadd %s496, %s501
          %s503 = smul.addr %s39, 128
          %s504 = scalar_lea.hbm %s1, %s503
          %s506 = sshll.u32 %s499, 4
          %s507 = int_to_ptr.vmem [resolvable:$true] %s506
          %509 = dma.hbm_to_vmem [thread:$0]  %s504, 128, %s507, %s496
        $region64: #{tpu_custom_call.1} parent=55 // pred_fallthru
          _
      $region56: #{tpu_custom_call.1} parent=5 // pred_fallthru
        _
      %p510 = scmp.le.s32.totalorder 1, %s32
      %p511 = scmp.lt.s32.totalorder %s32, 3
      %p512 = pnand %p510, %p511
      %p513 = pneg %p512
      // Predicated region
      $region65: #{tpu_custom_call.1} parent=5 // pred_check
        _
      $region66: #{tpu_custom_call.1} parent=5 // pred_check_branch
        %515 = sbr.rel (%p512) target = $region68
      $region67: #{tpu_custom_call.1} parent=5 // pred_region
        %s516 = ssub.s32 %s32, 1
        %s517 = sand.u32 %s59, 1
        %s518 = scalar_lea.sflag [#allocation5], %s517
        %s519 = sand.u32 %s59, 1
        %s520 = smul.addr %s519, 8
        %s521 = scalar_lea.vmem [#allocation4], %s520
        // Predicated region
        $region69: #{tpu_custom_call.1} parent=67 // pred_check
          %p522 = pneg %p72
        $region70: #{tpu_custom_call.1} parent=67 // pred_check_branch
          %524 = sbr.rel (%p522) target = $region72
        $region71: #{tpu_custom_call.1} parent=67 // pred_region
          %525 = dma.done %s518, 128
        $region72: #{tpu_custom_call.1} parent=67 // pred_fallthru
          _
        %s526 = sand.u32 %s37, 1
        %s527 = scalar_lea.sflag [#allocation8], %s526
        %s528 = sand.u32 %s85, 1
        %s529 = smul.addr %s528, 8
        %s530 = scalar_lea.vmem [#allocation7], %s529
        // Predicated region
        $region73: #{tpu_custom_call.1} parent=67 // pred_check
          %p531 = pneg %p98
        $region74: #{tpu_custom_call.1} parent=67 // pred_check_branch
          %533 = sbr.rel (%p531) target = $region76
        $region75: #{tpu_custom_call.1} parent=67 // pred_region
          %534 = dma.done %s527, 128
        $region76: #{tpu_custom_call.1} parent=67 // pred_fallthru
          _
        // Predicated region
        $region77: #{tpu_custom_call.1} parent=67 // pred_check
          %p535 = pneg %p119
        $region78: #{tpu_custom_call.1} parent=67 // pred_check_branch
          %537 = sbr.rel (%p535) target = $region80
        $region79: #{tpu_custom_call.1} parent=67 // pred_region
          %538 = dma.done [#allocation8], 512
        $region80: #{tpu_custom_call.1} parent=67 // pred_fallthru
          _
        // Predicated region
        $region81: #{tpu_custom_call.1} parent=67 // pred_check
          %p539 = pneg %p140
        $region82: #{tpu_custom_call.1} parent=67 // pred_check_branch
          %541 = sbr.rel (%p539) target = $region84
        $region83: #{tpu_custom_call.1} parent=67 // pred_region
          %542 = dma.done [#allocation11], 16
        $region84: #{tpu_custom_call.1} parent=67 // pred_fallthru
          _
        // Predicated region
        $region85: #{tpu_custom_call.1} parent=67 // pred_check
          %p543 = pneg %p161
        $region86: #{tpu_custom_call.1} parent=67 // pred_check_branch
          %545 = sbr.rel (%p543) target = $region88
        $region87: #{tpu_custom_call.1} parent=67 // pred_region
          %546 = dma.done [#allocation11], 512
        $region88: #{tpu_custom_call.1} parent=67 // pred_fallthru
          _
        // Predicated region
        $region89: #{tpu_custom_call.1} parent=67 // pred_check
          %p547 = pneg %p182
        $region90: #{tpu_custom_call.1} parent=67 // pred_check_branch
          %549 = sbr.rel (%p547) target = $region92
        $region91: #{tpu_custom_call.1} parent=67 // pred_region
          %550 = dma.done [#allocation14], 16
        $region92: #{tpu_custom_call.1} parent=67 // pred_fallthru
          _
        // Predicated region
        $region93: #{tpu_custom_call.1} parent=67 // pred_check
          %p551 = pneg %p203
        $region94: #{tpu_custom_call.1} parent=67 // pred_check_branch
          %553 = sbr.rel (%p551) target = $region96
        $region95: #{tpu_custom_call.1} parent=67 // pred_region
          %554 = dma.done [#allocation14], 512
        $region96: #{tpu_custom_call.1} parent=67 // pred_fallthru
          _
        // Predicated region
        $region97: #{tpu_custom_call.1} parent=67 // pred_check
          %p555 = pneg %p224
        $region98: #{tpu_custom_call.1} parent=67 // pred_check_branch
          %557 = sbr.rel (%p555) target = $region100
        $region99: #{tpu_custom_call.1} parent=67 // pred_region
          %558 = dma.done [#allocation17], 16
        $region100: #{tpu_custom_call.1} parent=67 // pred_fallthru
          _
        // Predicated region
        $region101: #{tpu_custom_call.1} parent=67 // pred_check
          %p559 = pneg %p245
        $region102: #{tpu_custom_call.1} parent=67 // pred_check_branch
          %561 = sbr.rel (%p559) target = $region104
        $region103: #{tpu_custom_call.1} parent=67 // pred_region
          %562 = dma.done [#allocation17], 512
        $region104: #{tpu_custom_call.1} parent=67 // pred_fallthru
          _
        // Predicated region
        $region105: #{tpu_custom_call.1} parent=67 // pred_check
          %p563 = pneg %p266
        $region106: #{tpu_custom_call.1} parent=67 // pred_check_branch
          %565 = sbr.rel (%p563) target = $region108
        $region107: #{tpu_custom_call.1} parent=67 // pred_region
          %566 = dma.done [#allocation20], 16
        $region108: #{tpu_custom_call.1} parent=67 // pred_fallthru
          _
        // Predicated region
        $region109: #{tpu_custom_call.1} parent=67 // pred_check
          %p567 = pneg %p287
        $region110: #{tpu_custom_call.1} parent=67 // pred_check_branch
          %569 = sbr.rel (%p567) target = $region112
        $region111: #{tpu_custom_call.1} parent=67 // pred_region
          %570 = dma.done [#allocation20], 16
        $region112: #{tpu_custom_call.1} parent=67 // pred_fallthru
          _
        // Predicated region
        $region113: #{tpu_custom_call.1} parent=67 // pred_check
          %p571 = pneg %p308
        $region114: #{tpu_custom_call.1} parent=67 // pred_check_branch
          %573 = sbr.rel (%p571) target = $region116
        $region115: #{tpu_custom_call.1} parent=67 // pred_region
          %574 = dma.done [#allocation23], 16
        $region116: #{tpu_custom_call.1} parent=67 // pred_fallthru
          _
        %s575 = sand.u32 %s59, 1
        %s576 = scalar_lea.sflag [#allocation5], %s575
        %s577 = sand.u32 %s59, 1
        %s578 = smul.addr %s577, 8
        %s579 = scalar_lea.vmem [#allocation4], %s578
        %p580 = pneg %p72
        %p581 = pneg %p69
        %s582 = sand.u32 %s37, 1
        %s583 = scalar_lea.sflag [#allocation8], %s582
        %s584 = sand.u32 %s85, 1
        %s585 = smul.addr %s584, 8
        %s586 = scalar_lea.vmem [#allocation7], %s585
        %p587 = pneg %p98
        %p588 = pneg %p95
        %p589 = pneg %p119
        %p590 = pneg %p116
        %p591 = pneg %p140
        %p592 = pneg %p137
        %p593 = pneg %p161
        %p594 = pneg %p158
        %p595 = pneg %p182
        %p596 = pneg %p179
        %p597 = pneg %p203
        %p598 = pneg %p200
        %p599 = pneg %p224
        %p600 = pneg %p221
        %p601 = pneg %p245
        %p602 = pneg %p242
        %p603 = pneg %p266
        %p604 = pneg %p263
        %p605 = pneg %p287
        %p606 = pneg %p284
        %p607 = pneg %p308
        %p608 = pneg %p305
        %p609 = pneg %p336
        %p610 = pneg %p333
        %s611 = sand.u32 %s323, 1
        %s612 = scalar_lea.sflag [#allocation6], %s611
        %s613 = sand.u32 %s323, 1
        %s614 = smul.addr %s613, 8
        %s615 = scalar_lea.vmem [#allocation24], %s614
        %v616 = vld [vmem:[%s521] sm:$0xff]
        %p617 = scmp.eq.s32.totalorder %s42, 0
        // Predicated region
        $region117: #{tpu_custom_call.1} parent=67 // pred_check
          %p618 = pneg %p617
        $region118: #{tpu_custom_call.1} parent=67 // pred_check_branch
          %620 = sbr.rel (%p618) target = $region120
        $region119: #{tpu_custom_call.1} parent=67 // pred_region
          %v621 = vld [vmem:[%s530] sm:$0xff]
          %v622 = vld [vmem:[#allocation12] sm:$0xff]
          %v623 = vld [vmem:[#allocation12 + $0x8] sm:$0xff]
          %v624 = vld [vmem:[#allocation12 + $0x10] sm:$0xff]
          %v625 = vld [vmem:[#allocation12 + $0x18] sm:$0xff]
          %v626 = vld [vmem:[#allocation13] sm:$0x1]
          %v628 = vlaneseq
          %v629 = vshrl.u32 %v628, 7
          %v630 = vsub.s32 0, %v629
          %v631 = vrot.slane %v626, %v630
          %vm633 = vcmask 261120
          %v635 = vsel %vm633, %v621, 0
          %637 = vmatprep.subr.mxu0 0.0
          %638 = vmatpush1.msra.mxu0 %v622
          %639 = vmatprep.subr.mxu0 0.0
          %640 = vmatpush1.msra.mxu0 %v623
          %641 = vmatprep.subr.mxu0 0.0
          %642 = vmatpush1.msra.mxu0 %v624
          %643 = vmatprep.subr.mxu0 0.0
          %644 = vmatpush1.msra.mxu0 %v625
          %645 = vmatprep.subr.mxu0 0.0
          %646 = vmatpush1.msra.mxu0 0.0
          %647 = vmatprep.subr.mxu0 0.0
          %648 = vmatpush1.msra.mxu0 0.0
          %649 = vmatprep.subr.mxu0 0.0
          %650 = vmatpush1.msra.mxu0 0.0
          %651 = vmatprep.subr.mxu0 0.0
          %652 = vmatpush1.msra.mxu0 0.0
          %653 = vmatprep.subr.mxu0 0.0
          %654 = vmatpush1.msra.mxu0 0.0
          %655 = vmatprep.subr.mxu0 0.0
          %656 = vmatpush1.msra.mxu0 0.0
          %657 = vmatprep.subr.mxu0 0.0
          %658 = vmatpush1.msra.mxu0 0.0
          %659 = vmatprep.subr.mxu0 0.0
          %660 = vmatpush1.msra.mxu0 0.0
          %661 = vmatprep.subr.mxu0 0.0
          %662 = vmatpush1.msra.mxu0 0.0
          %663 = vmatprep.subr.mxu0 0.0
          %664 = vmatpush1.msra.mxu0 0.0
          %665 = vmatprep.subr.mxu0 0.0
          %666 = vmatpush1.msra.mxu0 0.0
          %667 = vmatprep.subr.mxu0 0.0
          %668 = vmatpush1.msra.mxu0 0.0
          %669 = vmatprep.subr.mxu0 0.0
          %670 = vmatpush1.msra.mxu0 0.0
          %671 = vmatprep.subr.mxu0 0.0
          %672 = vmatpush1.msra.mxu0 0.0
          %673 = vmatprep.subr.mxu0 0.0
          %674 = vmatpush1.msra.mxu0 0.0
          %675 = vmatprep.subr.mxu0 0.0
          %676 = vmatpush1.msra.mxu0 0.0
          %677 = vmatprep.subr.mxu0 0.0
          %678 = vmatpush1.msra.mxu0 0.0
          %679 = vmatprep.subr.mxu0 0.0
          %680 = vmatpush1.msra.mxu0 0.0
          %681 = vmatprep.subr.mxu0 0.0
          %682 = vmatpush1.msra.mxu0 0.0
          %683 = vmatprep.subr.mxu0 0.0
          %684 = vmatpush1.msra.mxu0 0.0
          %685 = vmatprep.subr.mxu0 0.0
          %686 = vmatpush1.msra.mxu0 0.0
          %687 = vmatprep.subr.mxu0 0.0
          %688 = vmatpush1.msra.mxu0 0.0
          %689 = vmatprep.subr.mxu0 0.0
          %690 = vmatpush1.msra.mxu0 0.0
          %691 = vmatprep.subr.mxu0 0.0
          %692 = vmatpush1.msra.mxu0 0.0
          %693 = vmatprep.subr.mxu0 0.0
          %694 = vmatpush1.msra.mxu0 0.0
          %695 = vmatprep.subr.mxu0 0.0
          %696 = vmatpush1.msra.mxu0 0.0
          %697 = vmatprep.subr.mxu0 0.0
          %698 = vmatpush1.msra.mxu0 0.0
          %699 = vmatprep.subr.mxu0 0.0
          %700 = vmatpush1.msra.mxu0 0.0
          %701 = vmatprep.mubr.f32.mxu0 0.0
          %702 = vmatmul.mubr.f32.gmra.mrb[0].mxu0 %v635
          %v703 = vpop.f32.mrb[0].mxu0
          %v704 = vadd.f32 %v631, %v703
          %v705 = vpop.f32.mrb[0].mxu0
          %706 = vdwg.mxu0
          %v707 = vld [vmem:[#allocation15] sm:$0xff]
          %v708 = vld [vmem:[#allocation15 + $0x8] sm:$0xff]
          %v709 = vld [vmem:[#allocation15 + $0x10] sm:$0xff]
          %v710 = vld [vmem:[#allocation15 + $0x18] sm:$0xff]
          %v711 = vld [vmem:[#allocation16] sm:$0x1]
          %v713 = vlaneseq
          %v714 = vshrl.u32 %v713, 7
          %v715 = vsub.s32 0, %v714
          %v716 = vrot.slane %v711, %v715
          %718 = vmatprep.subr.mxu0 0.0
          %719 = vmatpush1.msra.mxu0 %v707
          %720 = vmatprep.subr.mxu0 0.0
          %721 = vmatpush1.msra.mxu0 %v708
          %722 = vmatprep.subr.mxu0 0.0
          %723 = vmatpush1.msra.mxu0 %v709
          %724 = vmatprep.subr.mxu0 0.0
          %725 = vmatpush1.msra.mxu0 %v710
          %726 = vmatprep.subr.mxu0 0.0
          %727 = vmatpush1.msra.mxu0 0.0
          %728 = vmatprep.subr.mxu0 0.0
          %729 = vmatpush1.msra.mxu0 0.0
          %730 = vmatprep.subr.mxu0 0.0
          %731 = vmatpush1.msra.mxu0 0.0
          %732 = vmatprep.subr.mxu0 0.0
          %733 = vmatpush1.msra.mxu0 0.0
          %734 = vmatprep.subr.mxu0 0.0
          %735 = vmatpush1.msra.mxu0 0.0
          %736 = vmatprep.subr.mxu0 0.0
          %737 = vmatpush1.msra.mxu0 0.0
          %738 = vmatprep.subr.mxu0 0.0
          %739 = vmatpush1.msra.mxu0 0.0
          %740 = vmatprep.subr.mxu0 0.0
          %741 = vmatpush1.msra.mxu0 0.0
          %742 = vmatprep.subr.mxu0 0.0
          %743 = vmatpush1.msra.mxu0 0.0
          %744 = vmatprep.subr.mxu0 0.0
          %745 = vmatpush1.msra.mxu0 0.0
          %746 = vmatprep.subr.mxu0 0.0
          %747 = vmatpush1.msra.mxu0 0.0
          %748 = vmatprep.subr.mxu0 0.0
          %749 = vmatpush1.msra.mxu0 0.0
          %750 = vmatprep.subr.mxu0 0.0
          %751 = vmatpush1.msra.mxu0 0.0
          %752 = vmatprep.subr.mxu0 0.0
          %753 = vmatpush1.msra.mxu0 0.0
          %754 = vmatprep.subr.mxu0 0.0
          %755 = vmatpush1.msra.mxu0 0.0
          %756 = vmatprep.subr.mxu0 0.0
          %757 = vmatpush1.msra.mxu0 0.0
          %758 = vmatprep.subr.mxu0 0.0
          %759 = vmatpush1.msra.mxu0 0.0
          %760 = vmatprep.subr.mxu0 0.0
          %761 = vmatpush1.msra.mxu0 0.0
          %762 = vmatprep.subr.mxu0 0.0
          %763 = vmatpush1.msra.mxu0 0.0
          %764 = vmatprep.subr.mxu0 0.0
          %765 = vmatpush1.msra.mxu0 0.0
          %766 = vmatprep.subr.mxu0 0.0
          %767 = vmatpush1.msra.mxu0 0.0
          %768 = vmatprep.subr.mxu0 0.0
          %769 = vmatpush1.msra.mxu0 0.0
          %770 = vmatprep.subr.mxu0 0.0
          %771 = vmatpush1.msra.mxu0 0.0
          %772 = vmatprep.subr.mxu0 0.0
          %773 = vmatpush1.msra.mxu0 0.0
          %774 = vmatprep.subr.mxu0 0.0
          %775 = vmatpush1.msra.mxu0 0.0
          %776 = vmatprep.subr.mxu0 0.0
          %777 = vmatpush1.msra.mxu0 0.0
          %778 = vmatprep.subr.mxu0 0.0
          %779 = vmatpush1.msra.mxu0 0.0
          %780 = vmatprep.subr.mxu0 0.0
          %781 = vmatpush1.msra.mxu0 0.0
          %782 = vmatprep.mubr.f32.mxu0 0.0
          %783 = vmatmul.mubr.f32.gmra.mrb[0].mxu0 %v635
          %v784 = vpop.f32.mrb[0].mxu0
          %v785 = vadd.f32 %v716, %v784
          %v786 = vpop.f32.mrb[0].mxu0
          %787 = vdwg.mxu0
          %789 = vrot.lane.b32.xlu0 %v704, 120
          %v790 = vpop.permute.xlu0 %789
          %792 = vrot.lane.b32.xlu0 %v704, 112
          %v793 = vpop.permute.xlu0 %792
          %795 = vrot.lane.b32.xlu0 %v704, 104
          %v796 = vpop.permute.xlu0 %795
          %v798 = vcombine.low %v704, %v793
          %v799 = vcombine.high %v704, %v793
          %v801 = vunpack.c.l.s4 1983009808
          %v802 = vunpack.c.0.s8 %v801
          %v803 = vlaneseq
          %v804 = vshrl.u32 %v803, 7
          %v805 = vsub.s32 %v802, %v804
          %v806 = vrot.slane %v798, %v805
          %v808 = vunpack.c.l.s4 1983009808
          %v809 = vunpack.c.0.s8 %v808
          %v810 = vlaneseq
          %v811 = vshrl.u32 %v810, 7
          %v812 = vsub.s32 %v809, %v811
          %v813 = vrot.slane %v799, %v812
          %v814 = vcombine.low %v790, %v796
          %v815 = vcombine.high %v790, %v796
          %v817 = vunpack.c.l.s4 1983009808
          %v818 = vunpack.c.0.s8 %v817
          %v819 = vlaneseq
          %v820 = vshrl.u32 %v819, 7
          %v821 = vsub.s32 %v818, %v820
          %v822 = vrot.slane %v814, %v821
          %v824 = vunpack.c.l.s4 1983009808
          %v825 = vunpack.c.0.s8 %v824
          %v826 = vlaneseq
          %v827 = vshrl.u32 %v826, 7
          %v828 = vsub.s32 %v825, %v827
          %v829 = vrot.slane %v815, %v828
          %v830 = vcombine.low %v806, %v822
          %v831 = vcombine.high %v806, %v822
          %v833 = vunpack.c.l.s4 1934713408
          %v834 = vunpack.c.0.s8 %v833
          %v835 = vlaneseq
          %v836 = vshrl.u32 %v835, 7
          %v837 = vsub.s32 %v834, %v836
          %v838 = vrot.slane %v830, %v837
          %v840 = vunpack.c.l.s4 1934713408
          %v841 = vunpack.c.0.s8 %v840
          %v842 = vlaneseq
          %v843 = vshrl.u32 %v842, 7
          %v844 = vsub.s32 %v841, %v843
          %v845 = vrot.slane %v831, %v844
          %v846 = vcombine.low %v813, %v829
          %v847 = vcombine.high %v813, %v829
          %v849 = vunpack.c.l.s4 1934713408
          %v850 = vunpack.c.0.s8 %v849
          %v851 = vlaneseq
          %v852 = vshrl.u32 %v851, 7
          %v853 = vsub.s32 %v850, %v852
          %v854 = vrot.slane %v846, %v853
          %v856 = vunpack.c.l.s4 1934713408
          %v857 = vunpack.c.0.s8 %v856
          %v858 = vlaneseq
          %v859 = vshrl.u32 %v858, 7
          %v860 = vsub.s32 %v857, %v859
          %v861 = vrot.slane %v847, %v860
          %v862 = vcombine.high %v838, 0.0
          %v863 = vcombine.high %v845, 0.0
          %v864 = vcombine.high %v854, 0.0
          %v865 = vcombine.high %v861, 0.0
          %v866 = vcombine.low %v838, %v845
          %v868 = vunpack.c.l.s4 1983009808
          %v869 = vunpack.c.0.s8 %v868
          %v870 = vlaneseq
          %v871 = vshrl.u32 %v870, 7
          %v872 = vsub.s32 %v869, %v871
          %v873 = vrot.slane %v866, %v872
          %v874 = vcombine.low %v862, %v863
          %v876 = vunpack.c.l.s4 1983009808
          %v877 = vunpack.c.0.s8 %v876
          %v878 = vlaneseq
          %v879 = vshrl.u32 %v878, 7
          %v880 = vsub.s32 %v877, %v879
          %v881 = vrot.slane %v874, %v880
          %v882 = vcombine.low %v854, %v861
          %v884 = vunpack.c.l.s4 1983009808
          %v885 = vunpack.c.0.s8 %v884
          %v886 = vlaneseq
          %v887 = vshrl.u32 %v886, 7
          %v888 = vsub.s32 %v885, %v887
          %v889 = vrot.slane %v882, %v888
          %v890 = vcombine.low %v864, %v865
          %v892 = vunpack.c.l.s4 1983009808
          %v893 = vunpack.c.0.s8 %v892
          %v894 = vlaneseq
          %v895 = vshrl.u32 %v894, 7
          %v896 = vsub.s32 %v893, %v895
          %v897 = vrot.slane %v890, %v896
          %v898 = vcombine.low %v873, %v881
          %v899 = vcombine.high %v873, %v881
          %v901 = vunpack.c.l.s4 1934713408
          %v902 = vunpack.c.0.s8 %v901
          %v903 = vlaneseq
          %v904 = vshrl.u32 %v903, 7
          %v905 = vsub.s32 %v902, %v904
          %v906 = vrot.slane %v898, %v905
          %v908 = vunpack.c.l.s4 1934713408
          %v909 = vunpack.c.0.s8 %v908
          %v910 = vlaneseq
          %v911 = vshrl.u32 %v910, 7
          %v912 = vsub.s32 %v909, %v911
          %v913 = vrot.slane %v899, %v912
          %v914 = vcombine.low %v889, %v897
          %v915 = vcombine.high %v889, %v897
          %v917 = vunpack.c.l.s4 1934713408
          %v918 = vunpack.c.0.s8 %v917
          %v919 = vlaneseq
          %v920 = vshrl.u32 %v919, 7
          %v921 = vsub.s32 %v918, %v920
          %v922 = vrot.slane %v914, %v921
          %v924 = vunpack.c.l.s4 1934713408
          %v925 = vunpack.c.0.s8 %v924
          %v926 = vlaneseq
          %v927 = vshrl.u32 %v926, 7
          %v928 = vsub.s32 %v925, %v927
          %v929 = vrot.slane %v915, %v928
          %v930 = vcombine.low %v906, %v922
          %v931 = vcombine.high %v906, %v922
          %v932 = vcombine.low %v913, %v929
          %v933 = vcombine.high %v913, %v929
          %vm934 = vcmask 64512
          %935 = vst.msk [vmem:[#allocation2] sm:$0xff] %vm934, %v930
          %936 = vst.msk [vmem:[#allocation2 + $0x8] sm:$0xff] %vm934, %v931
          %937 = vst.msk [vmem:[#allocation2 + $0x10] sm:$0xff] %vm934, %v932
          %938 = vst.msk [vmem:[#allocation2 + $0x18] sm:$0xff] %vm934, %v933
          %940 = vrot.lane.b32.xlu0 %v785, 120
          %v941 = vpop.permute.xlu0 %940
          %943 = vrot.lane.b32.xlu0 %v785, 112
          %v944 = vpop.permute.xlu0 %943
          %946 = vrot.lane.b32.xlu0 %v785, 104
          %v947 = vpop.permute.xlu0 %946
          %v949 = vcombine.low %v785, %v944
          %v950 = vcombine.high %v785, %v944
          %v952 = vunpack.c.l.s4 1983009808
          %v953 = vunpack.c.0.s8 %v952
          %v954 = vlaneseq
          %v955 = vshrl.u32 %v954, 7
          %v956 = vsub.s32 %v953, %v955
          %v957 = vrot.slane %v949, %v956
          %v959 = vunpack.c.l.s4 1983009808
          %v960 = vunpack.c.0.s8 %v959
          %v961 = vlaneseq
          %v962 = vshrl.u32 %v961, 7
          %v963 = vsub.s32 %v960, %v962
          %v964 = vrot.slane %v950, %v963
          %v965 = vcombine.low %v941, %v947
          %v966 = vcombine.high %v941, %v947
          %v968 = vunpack.c.l.s4 1983009808
          %v969 = vunpack.c.0.s8 %v968
          %v970 = vlaneseq
          %v971 = vshrl.u32 %v970, 7
          %v972 = vsub.s32 %v969, %v971
          %v973 = vrot.slane %v965, %v972
          %v975 = vunpack.c.l.s4 1983009808
          %v976 = vunpack.c.0.s8 %v975
          %v977 = vlaneseq
          %v978 = vshrl.u32 %v977, 7
          %v979 = vsub.s32 %v976, %v978
          %v980 = vrot.slane %v966, %v979
          %v981 = vcombine.low %v957, %v973
          %v982 = vcombine.high %v957, %v973
          %v984 = vunpack.c.l.s4 1934713408
          %v985 = vunpack.c.0.s8 %v984
          %v986 = vlaneseq
          %v987 = vshrl.u32 %v986, 7
          %v988 = vsub.s32 %v985, %v987
          %v989 = vrot.slane %v981, %v988
          %v991 = vunpack.c.l.s4 1934713408
          %v992 = vunpack.c.0.s8 %v991
          %v993 = vlaneseq
          %v994 = vshrl.u32 %v993, 7
          %v995 = vsub.s32 %v992, %v994
          %v996 = vrot.slane %v982, %v995
          %v997 = vcombine.low %v964, %v980
          %v998 = vcombine.high %v964, %v980
          %v1000 = vunpack.c.l.s4 1934713408
          %v1001 = vunpack.c.0.s8 %v1000
          %v1002 = vlaneseq
          %v1003 = vshrl.u32 %v1002, 7
          %v1004 = vsub.s32 %v1001, %v1003
          %v1005 = vrot.slane %v997, %v1004
          %v1007 = vunpack.c.l.s4 1934713408
          %v1008 = vunpack.c.0.s8 %v1007
          %v1009 = vlaneseq
          %v1010 = vshrl.u32 %v1009, 7
          %v1011 = vsub.s32 %v1008, %v1010
          %v1012 = vrot.slane %v998, %v1011
          %v1013 = vcombine.high %v989, 0.0
          %v1014 = vcombine.high %v996, 0.0
          %v1015 = vcombine.high %v1005, 0.0
          %v1016 = vcombine.high %v1012, 0.0
          %v1017 = vcombine.low %v989, %v996
          %v1019 = vunpack.c.l.s4 1983009808
          %v1020 = vunpack.c.0.s8 %v1019
          %v1021 = vlaneseq
          %v1022 = vshrl.u32 %v1021, 7
          %v1023 = vsub.s32 %v1020, %v1022
          %v1024 = vrot.slane %v1017, %v1023
          %v1025 = vcombine.low %v1013, %v1014
          %v1027 = vunpack.c.l.s4 1983009808
          %v1028 = vunpack.c.0.s8 %v1027
          %v1029 = vlaneseq
          %v1030 = vshrl.u32 %v1029, 7
          %v1031 = vsub.s32 %v1028, %v1030
          %v1032 = vrot.slane %v1025, %v1031
          %v1033 = vcombine.low %v1005, %v1012
          %v1035 = vunpack.c.l.s4 1983009808
          %v1036 = vunpack.c.0.s8 %v1035
          %v1037 = vlaneseq
          %v1038 = vshrl.u32 %v1037, 7
          %v1039 = vsub.s32 %v1036, %v1038
          %v1040 = vrot.slane %v1033, %v1039
          %v1041 = vcombine.low %v1015, %v1016
          %v1043 = vunpack.c.l.s4 1983009808
          %v1044 = vunpack.c.0.s8 %v1043
          %v1045 = vlaneseq
          %v1046 = vshrl.u32 %v1045, 7
          %v1047 = vsub.s32 %v1044, %v1046
          %v1048 = vrot.slane %v1041, %v1047
          %v1049 = vcombine.low %v1024, %v1032
          %v1050 = vcombine.high %v1024, %v1032
          %v1052 = vunpack.c.l.s4 1934713408
          %v1053 = vunpack.c.0.s8 %v1052
          %v1054 = vlaneseq
          %v1055 = vshrl.u32 %v1054, 7
          %v1056 = vsub.s32 %v1053, %v1055
          %v1057 = vrot.slane %v1049, %v1056
          %v1059 = vunpack.c.l.s4 1934713408
          %v1060 = vunpack.c.0.s8 %v1059
          %v1061 = vlaneseq
          %v1062 = vshrl.u32 %v1061, 7
          %v1063 = vsub.s32 %v1060, %v1062
          %v1064 = vrot.slane %v1050, %v1063
          %v1065 = vcombine.low %v1040, %v1048
          %v1066 = vcombine.high %v1040, %v1048
          %v1068 = vunpack.c.l.s4 1934713408
          %v1069 = vunpack.c.0.s8 %v1068
          %v1070 = vlaneseq
          %v1071 = vshrl.u32 %v1070, 7
          %v1072 = vsub.s32 %v1069, %v1071
          %v1073 = vrot.slane %v1065, %v1072
          %v1075 = vunpack.c.l.s4 1934713408
          %v1076 = vunpack.c.0.s8 %v1075
          %v1077 = vlaneseq
          %v1078 = vshrl.u32 %v1077, 7
          %v1079 = vsub.s32 %v1076, %v1078
          %v1080 = vrot.slane %v1066, %v1079
          %v1081 = vcombine.low %v1057, %v1073
          %v1082 = vcombine.high %v1057, %v1073
          %v1083 = vcombine.low %v1064, %v1080
          %v1084 = vcombine.high %v1064, %v1080
          %1085 = vst.msk [vmem:[#allocation3] sm:$0xff] %vm934, %v1081
          %1086 = vst.msk [vmem:[#allocation3 + $0x8] sm:$0xff] %vm934, %v1082
          %1087 = vst.msk [vmem:[#allocation3 + $0x10] sm:$0xff] %vm934, %v1083
          %1088 = vst.msk [vmem:[#allocation3 + $0x18] sm:$0xff] %vm934, %v1084
        $region120: #{tpu_custom_call.1} parent=67 // pred_fallthru
          _
        %v1089 = vld [vmem:[#allocation9] sm:$0xff]
        %v1090 = vld [vmem:[#allocation9 + $0x8] sm:$0xff]
        %v1091 = vld [vmem:[#allocation9 + $0x10] sm:$0xff]
        %v1092 = vld [vmem:[#allocation9 + $0x18] sm:$0xff]
        %v1093 = vld [vmem:[#allocation10] sm:$0x1]
        %v1095 = vlaneseq
        %v1096 = vshrl.u32 %v1095, 7
        %v1097 = vsub.s32 0, %v1096
        %v1098 = vrot.slane %v1093, %v1097
        %vm1100 = vcmask 261120
        %v1102 = vsel %vm1100, %v616, 0
        %1104 = vmatprep.subr.mxu0 0.0
        %1105 = vmatpush1.msra.mxu0 %v1089
        %1106 = vmatprep.subr.mxu0 0.0
        %1107 = vmatpush1.msra.mxu0 %v1090
        %1108 = vmatprep.subr.mxu0 0.0
        %1109 = vmatpush1.msra.mxu0 %v1091
        %1110 = vmatprep.subr.mxu0 0.0
        %1111 = vmatpush1.msra.mxu0 %v1092
        %1112 = vmatprep.subr.mxu0 0.0
        %1113 = vmatpush1.msra.mxu0 0.0
        %1114 = vmatprep.subr.mxu0 0.0
        %1115 = vmatpush1.msra.mxu0 0.0
        %1116 = vmatprep.subr.mxu0 0.0
        %1117 = vmatpush1.msra.mxu0 0.0
        %1118 = vmatprep.subr.mxu0 0.0
        %1119 = vmatpush1.msra.mxu0 0.0
        %1120 = vmatprep.subr.mxu0 0.0
        %1121 = vmatpush1.msra.mxu0 0.0
        %1122 = vmatprep.subr.mxu0 0.0
        %1123 = vmatpush1.msra.mxu0 0.0
        %1124 = vmatprep.subr.mxu0 0.0
        %1125 = vmatpush1.msra.mxu0 0.0
        %1126 = vmatprep.subr.mxu0 0.0
        %1127 = vmatpush1.msra.mxu0 0.0
        %1128 = vmatprep.subr.mxu0 0.0
        %1129 = vmatpush1.msra.mxu0 0.0
        %1130 = vmatprep.subr.mxu0 0.0
        %1131 = vmatpush1.msra.mxu0 0.0
        %1132 = vmatprep.subr.mxu0 0.0
        %1133 = vmatpush1.msra.mxu0 0.0
        %1134 = vmatprep.subr.mxu0 0.0
        %1135 = vmatpush1.msra.mxu0 0.0
        %1136 = vmatprep.subr.mxu0 0.0
        %1137 = vmatpush1.msra.mxu0 0.0
        %1138 = vmatprep.subr.mxu0 0.0
        %1139 = vmatpush1.msra.mxu0 0.0
        %1140 = vmatprep.subr.mxu0 0.0
        %1141 = vmatpush1.msra.mxu0 0.0
        %1142 = vmatprep.subr.mxu0 0.0
        %1143 = vmatpush1.msra.mxu0 0.0
        %1144 = vmatprep.subr.mxu0 0.0
        %1145 = vmatpush1.msra.mxu0 0.0
        %1146 = vmatprep.subr.mxu0 0.0
        %1147 = vmatpush1.msra.mxu0 0.0
        %1148 = vmatprep.subr.mxu0 0.0
        %1149 = vmatpush1.msra.mxu0 0.0
        %1150 = vmatprep.subr.mxu0 0.0
        %1151 = vmatpush1.msra.mxu0 0.0
        %1152 = vmatprep.subr.mxu0 0.0
        %1153 = vmatpush1.msra.mxu0 0.0
        %1154 = vmatprep.subr.mxu0 0.0
        %1155 = vmatpush1.msra.mxu0 0.0
        %1156 = vmatprep.subr.mxu0 0.0
        %1157 = vmatpush1.msra.mxu0 0.0
        %1158 = vmatprep.subr.mxu0 0.0
        %1159 = vmatpush1.msra.mxu0 0.0
        %1160 = vmatprep.subr.mxu0 0.0
        %1161 = vmatpush1.msra.mxu0 0.0
        %1162 = vmatprep.subr.mxu0 0.0
        %1163 = vmatpush1.msra.mxu0 0.0
        %1164 = vmatprep.subr.mxu0 0.0
        %1165 = vmatpush1.msra.mxu0 0.0
        %1166 = vmatprep.subr.mxu0 0.0
        %1167 = vmatpush1.msra.mxu0 0.0
        %1168 = vmatprep.mubr.f32.mxu0 0.0
        %1169 = vmatmul.mubr.f32.gmra.mrb[0].mxu0 %v1102
        %v1170 = vpop.f32.mrb[0].mxu0
        %v1171 = vadd.f32 %v1098, %v1170
        %v1172 = vpop.f32.mrb[0].mxu0
        %1173 = vdwg.mxu0
        %1175 = vrot.lane.b32.xlu0 %v1171, 120
        %v1176 = vpop.permute.xlu0 %1175
        %1178 = vrot.lane.b32.xlu0 %v1171, 112
        %v1179 = vpop.permute.xlu0 %1178
        %1181 = vrot.lane.b32.xlu0 %v1171, 104
        %v1182 = vpop.permute.xlu0 %1181
        %v1184 = vcombine.low %v1171, %v1179
        %v1185 = vcombine.high %v1171, %v1179
        %v1187 = vunpack.c.l.s4 1983009808
        %v1188 = vunpack.c.0.s8 %v1187
        %v1189 = vlaneseq
        %v1190 = vshrl.u32 %v1189, 7
        %v1191 = vsub.s32 %v1188, %v1190
        %v1192 = vrot.slane %v1184, %v1191
        %v1194 = vunpack.c.l.s4 1983009808
        %v1195 = vunpack.c.0.s8 %v1194
        %v1196 = vlaneseq
        %v1197 = vshrl.u32 %v1196, 7
        %v1198 = vsub.s32 %v1195, %v1197
        %v1199 = vrot.slane %v1185, %v1198
        %v1200 = vcombine.low %v1176, %v1182
        %v1201 = vcombine.high %v1176, %v1182
        %v1203 = vunpack.c.l.s4 1983009808
        %v1204 = vunpack.c.0.s8 %v1203
        %v1205 = vlaneseq
        %v1206 = vshrl.u32 %v1205, 7
        %v1207 = vsub.s32 %v1204, %v1206
        %v1208 = vrot.slane %v1200, %v1207
        %v1210 = vunpack.c.l.s4 1983009808
        %v1211 = vunpack.c.0.s8 %v1210
        %v1212 = vlaneseq
        %v1213 = vshrl.u32 %v1212, 7
        %v1214 = vsub.s32 %v1211, %v1213
        %v1215 = vrot.slane %v1201, %v1214
        %v1216 = vcombine.low %v1192, %v1208
        %v1217 = vcombine.high %v1192, %v1208
        %v1219 = vunpack.c.l.s4 1934713408
        %v1220 = vunpack.c.0.s8 %v1219
        %v1221 = vlaneseq
        %v1222 = vshrl.u32 %v1221, 7
        %v1223 = vsub.s32 %v1220, %v1222
        %v1224 = vrot.slane %v1216, %v1223
        %v1226 = vunpack.c.l.s4 1934713408
        %v1227 = vunpack.c.0.s8 %v1226
        %v1228 = vlaneseq
        %v1229 = vshrl.u32 %v1228, 7
        %v1230 = vsub.s32 %v1227, %v1229
        %v1231 = vrot.slane %v1217, %v1230
        %v1232 = vcombine.low %v1199, %v1215
        %v1233 = vcombine.high %v1199, %v1215
        %v1235 = vunpack.c.l.s4 1934713408
        %v1236 = vunpack.c.0.s8 %v1235
        %v1237 = vlaneseq
        %v1238 = vshrl.u32 %v1237, 7
        %v1239 = vsub.s32 %v1236, %v1238
        %v1240 = vrot.slane %v1232, %v1239
        %v1242 = vunpack.c.l.s4 1934713408
        %v1243 = vunpack.c.0.s8 %v1242
        %v1244 = vlaneseq
        %v1245 = vshrl.u32 %v1244, 7
        %v1246 = vsub.s32 %v1243, %v1245
        %v1247 = vrot.slane %v1233, %v1246
        %v1248 = vcombine.high %v1224, 0.0
        %v1249 = vcombine.high %v1231, 0.0
        %v1250 = vcombine.high %v1240, 0.0
        %v1251 = vcombine.high %v1247, 0.0
        %v1252 = vcombine.low %v1224, %v1231
        %v1254 = vunpack.c.l.s4 1983009808
        %v1255 = vunpack.c.0.s8 %v1254
        %v1256 = vlaneseq
        %v1257 = vshrl.u32 %v1256, 7
        %v1258 = vsub.s32 %v1255, %v1257
        %v1259 = vrot.slane %v1252, %v1258
        %v1260 = vcombine.low %v1248, %v1249
        %v1262 = vunpack.c.l.s4 1983009808
        %v1263 = vunpack.c.0.s8 %v1262
        %v1264 = vlaneseq
        %v1265 = vshrl.u32 %v1264, 7
        %v1266 = vsub.s32 %v1263, %v1265
        %v1267 = vrot.slane %v1260, %v1266
        %v1268 = vcombine.low %v1240, %v1247
        %v1270 = vunpack.c.l.s4 1983009808
        %v1271 = vunpack.c.0.s8 %v1270
        %v1272 = vlaneseq
        %v1273 = vshrl.u32 %v1272, 7
        %v1274 = vsub.s32 %v1271, %v1273
        %v1275 = vrot.slane %v1268, %v1274
        %v1276 = vcombine.low %v1250, %v1251
        %v1278 = vunpack.c.l.s4 1983009808
        %v1279 = vunpack.c.0.s8 %v1278
        %v1280 = vlaneseq
        %v1281 = vshrl.u32 %v1280, 7
        %v1282 = vsub.s32 %v1279, %v1281
        %v1283 = vrot.slane %v1276, %v1282
        %v1284 = vcombine.low %v1259, %v1267
        %v1285 = vcombine.high %v1259, %v1267
        %v1287 = vunpack.c.l.s4 1934713408
        %v1288 = vunpack.c.0.s8 %v1287
        %v1289 = vlaneseq
        %v1290 = vshrl.u32 %v1289, 7
        %v1291 = vsub.s32 %v1288, %v1290
        %v1292 = vrot.slane %v1284, %v1291
        %v1294 = vunpack.c.l.s4 1934713408
        %v1295 = vunpack.c.0.s8 %v1294
        %v1296 = vlaneseq
        %v1297 = vshrl.u32 %v1296, 7
        %v1298 = vsub.s32 %v1295, %v1297
        %v1299 = vrot.slane %v1285, %v1298
        %v1300 = vcombine.low %v1275, %v1283
        %v1301 = vcombine.high %v1275, %v1283
        %v1303 = vunpack.c.l.s4 1934713408
        %v1304 = vunpack.c.0.s8 %v1303
        %v1305 = vlaneseq
        %v1306 = vshrl.u32 %v1305, 7
        %v1307 = vsub.s32 %v1304, %v1306
        %v1308 = vrot.slane %v1300, %v1307
        %v1310 = vunpack.c.l.s4 1934713408
        %v1311 = vunpack.c.0.s8 %v1310
        %v1312 = vlaneseq
        %v1313 = vshrl.u32 %v1312, 7
        %v1314 = vsub.s32 %v1311, %v1313
        %v1315 = vrot.slane %v1301, %v1314
        %v1316 = vcombine.low %v1292, %v1308
        %v1317 = vcombine.high %v1292, %v1308
        %v1318 = vcombine.low %v1299, %v1315
        %v1319 = vcombine.high %v1299, %v1315
        %v1320 = vld [vmem:[#allocation2] sm:$0xff]
        %v1321 = vld [vmem:[#allocation2 + $0x8] sm:$0xff]
        %v1322 = vld [vmem:[#allocation2 + $0x10] sm:$0xff]
        %v1323 = vld [vmem:[#allocation2 + $0x18] sm:$0xff]
        %v1324 = vld [vmem:[#allocation3] sm:$0xff]
        %v1325 = vld [vmem:[#allocation3 + $0x8] sm:$0xff]
        %v1326 = vld [vmem:[#allocation3 + $0x10] sm:$0xff]
        %v1327 = vld [vmem:[#allocation3 + $0x18] sm:$0xff]
        %vm1328 = vcmask 64512
        %v1330 = vsel %vm1328, %v1316, 0
        %v1333 = vsel %vm1328, %v1320, 0
        %1335 = vmatprep.subr.mxu0 0.0
        %1336 = vmatpush1.xpose.msra.mxu0 %v1333
        %1337 = vmatprep.subr.mxu0 0.0
        %1338 = vmatpush1.xpose.msra.mxu0 0.0
        %1339 = vmatprep.subr.mxu0 0.0
        %1340 = vmatpush1.xpose.msra.mxu0 0.0
        %1341 = vmatprep.subr.mxu0 0.0
        %1342 = vmatpush1.xpose.msra.mxu0 0.0
        %1343 = vmatprep.subr.mxu0 0.0
        %1344 = vmatpush1.xpose.msra.mxu0 0.0
        %1345 = vmatprep.subr.mxu0 0.0
        %1346 = vmatpush1.xpose.msra.mxu0 0.0
        %1347 = vmatprep.subr.mxu0 0.0
        %1348 = vmatpush1.xpose.msra.mxu0 0.0
        %1349 = vmatprep.subr.mxu0 0.0
        %1350 = vmatpush1.xpose.msra.mxu0 0.0
        %1351 = vmatprep.subr.mxu0 0.0
        %1352 = vmatpush1.xpose.msra.mxu0 0.0
        %1353 = vmatprep.subr.mxu0 0.0
        %1354 = vmatpush1.xpose.msra.mxu0 0.0
        %1355 = vmatprep.subr.mxu0 0.0
        %1356 = vmatpush1.xpose.msra.mxu0 0.0
        %1357 = vmatprep.subr.mxu0 0.0
        %1358 = vmatpush1.xpose.msra.mxu0 0.0
        %1359 = vmatprep.subr.mxu0 0.0
        %1360 = vmatpush1.xpose.msra.mxu0 0.0
        %1361 = vmatprep.subr.mxu0 0.0
        %1362 = vmatpush1.xpose.msra.mxu0 0.0
        %1363 = vmatprep.subr.mxu0 0.0
        %1364 = vmatpush1.xpose.msra.mxu0 0.0
        %1365 = vmatprep.subr.mxu0 0.0
        %1366 = vmatpush1.xpose.msra.mxu0 0.0
        %1367 = vmatprep.subr.mxu0 0.0
        %1368 = vmatpush1.xpose.msra.mxu0 0.0
        %1369 = vmatprep.subr.mxu0 0.0
        %1370 = vmatpush1.xpose.msra.mxu0 0.0
        %1371 = vmatprep.subr.mxu0 0.0
        %1372 = vmatpush1.xpose.msra.mxu0 0.0
        %1373 = vmatprep.subr.mxu0 0.0
        %1374 = vmatpush1.xpose.msra.mxu0 0.0
        %1375 = vmatprep.subr.mxu0 0.0
        %1376 = vmatpush1.xpose.msra.mxu0 0.0
        %1377 = vmatprep.subr.mxu0 0.0
        %1378 = vmatpush1.xpose.msra.mxu0 0.0
        %1379 = vmatprep.subr.mxu0 0.0
        %1380 = vmatpush1.xpose.msra.mxu0 0.0
        %1381 = vmatprep.subr.mxu0 0.0
        %1382 = vmatpush1.xpose.msra.mxu0 0.0
        %1383 = vmatprep.subr.mxu0 0.0
        %1384 = vmatpush1.xpose.msra.mxu0 0.0
        %1385 = vmatprep.subr.mxu0 0.0
        %1386 = vmatpush1.xpose.msra.mxu0 0.0
        %1387 = vmatprep.subr.mxu0 0.0
        %1388 = vmatpush1.xpose.msra.mxu0 0.0
        %1389 = vmatprep.subr.mxu0 0.0
        %1390 = vmatpush1.xpose.msra.mxu0 0.0
        %1391 = vmatprep.subr.mxu0 0.0
        %1392 = vmatpush1.xpose.msra.mxu0 0.0
        %1393 = vmatprep.subr.mxu0 0.0
        %1394 = vmatpush1.xpose.msra.mxu0 0.0
        %1395 = vmatprep.subr.mxu0 0.0
        %1396 = vmatpush1.xpose.msra.mxu0 0.0
        %1397 = vmatprep.subr.mxu0 0.0
        %1398 = vmatpush1.xpose.msra.mxu0 0.0
        %1399 = vmatprep.mubr.f32.mxu0 0.0
        %1400 = vmatmul.mubr.f32.gmra.mrb[0].mxu0 %v1330
        %v1401 = vpop.f32.mrb[0].mxu0
        %v1402 = vadd.f32 0.0, %v1401
        %v1403 = vpop.f32.mrb[0].mxu0
        %1404 = vdwg.mxu0
        %v1406 = vsel %vm1328, %v1317, 0
        %v1409 = vsel %vm1328, %v1321, 0
        %1411 = vmatprep.subr.mxu0 0.0
        %1412 = vmatpush1.xpose.msra.mxu0 %v1409
        %1413 = vmatprep.subr.mxu0 0.0
        %1414 = vmatpush1.xpose.msra.mxu0 0.0
        %1415 = vmatprep.subr.mxu0 0.0
        %1416 = vmatpush1.xpose.msra.mxu0 0.0
        %1417 = vmatprep.subr.mxu0 0.0
        %1418 = vmatpush1.xpose.msra.mxu0 0.0
        %1419 = vmatprep.subr.mxu0 0.0
        %1420 = vmatpush1.xpose.msra.mxu0 0.0
        %1421 = vmatprep.subr.mxu0 0.0
        %1422 = vmatpush1.xpose.msra.mxu0 0.0
        %1423 = vmatprep.subr.mxu0 0.0
        %1424 = vmatpush1.xpose.msra.mxu0 0.0
        %1425 = vmatprep.subr.mxu0 0.0
        %1426 = vmatpush1.xpose.msra.mxu0 0.0
        %1427 = vmatprep.subr.mxu0 0.0
        %1428 = vmatpush1.xpose.msra.mxu0 0.0
        %1429 = vmatprep.subr.mxu0 0.0
        %1430 = vmatpush1.xpose.msra.mxu0 0.0
        %1431 = vmatprep.subr.mxu0 0.0
        %1432 = vmatpush1.xpose.msra.mxu0 0.0
        %1433 = vmatprep.subr.mxu0 0.0
        %1434 = vmatpush1.xpose.msra.mxu0 0.0
        %1435 = vmatprep.subr.mxu0 0.0
        %1436 = vmatpush1.xpose.msra.mxu0 0.0
        %1437 = vmatprep.subr.mxu0 0.0
        %1438 = vmatpush1.xpose.msra.mxu0 0.0
        %1439 = vmatprep.subr.mxu0 0.0
        %1440 = vmatpush1.xpose.msra.mxu0 0.0
        %1441 = vmatprep.subr.mxu0 0.0
        %1442 = vmatpush1.xpose.msra.mxu0 0.0
        %1443 = vmatprep.subr.mxu0 0.0
        %1444 = vmatpush1.xpose.msra.mxu0 0.0
        %1445 = vmatprep.subr.mxu0 0.0
        %1446 = vmatpush1.xpose.msra.mxu0 0.0
        %1447 = vmatprep.subr.mxu0 0.0
        %1448 = vmatpush1.xpose.msra.mxu0 0.0
        %1449 = vmatprep.subr.mxu0 0.0
        %1450 = vmatpush1.xpose.msra.mxu0 0.0
        %1451 = vmatprep.subr.mxu0 0.0
        %1452 = vmatpush1.xpose.msra.mxu0 0.0
        %1453 = vmatprep.subr.mxu0 0.0
        %1454 = vmatpush1.xpose.msra.mxu0 0.0
        %1455 = vmatprep.subr.mxu0 0.0
        %1456 = vmatpush1.xpose.msra.mxu0 0.0
        %1457 = vmatprep.subr.mxu0 0.0
        %1458 = vmatpush1.xpose.msra.mxu0 0.0
        %1459 = vmatprep.subr.mxu0 0.0
        %1460 = vmatpush1.xpose.msra.mxu0 0.0
        %1461 = vmatprep.subr.mxu0 0.0
        %1462 = vmatpush1.xpose.msra.mxu0 0.0
        %1463 = vmatprep.subr.mxu0 0.0
        %1464 = vmatpush1.xpose.msra.mxu0 0.0
        %1465 = vmatprep.subr.mxu0 0.0
        %1466 = vmatpush1.xpose.msra.mxu0 0.0
        %1467 = vmatprep.subr.mxu0 0.0
        %1468 = vmatpush1.xpose.msra.mxu0 0.0
        %1469 = vmatprep.subr.mxu0 0.0
        %1470 = vmatpush1.xpose.msra.mxu0 0.0
        %1471 = vmatprep.subr.mxu0 0.0
        %1472 = vmatpush1.xpose.msra.mxu0 0.0
        %1473 = vmatprep.subr.mxu0 0.0
        %1474 = vmatpush1.xpose.msra.mxu0 0.0
        %1475 = vmatprep.mubr.f32.mxu0 0.0
        %1476 = vmatmul.mubr.f32.gmra.mrb[0].mxu0 %v1406
        %v1477 = vpop.f32.mrb[0].mxu0
        %v1478 = vadd.f32 0.0, %v1477
        %v1479 = vpop.f32.mrb[0].mxu0
        %1480 = vdwg.mxu0
        %v1482 = vsel %vm1328, %v1318, 0
        %v1485 = vsel %vm1328, %v1322, 0
        %1487 = vmatprep.subr.mxu0 0.0
        %1488 = vmatpush1.xpose.msra.mxu0 %v1485
        %1489 = vmatprep.subr.mxu0 0.0
        %1490 = vmatpush1.xpose.msra.mxu0 0.0
        %1491 = vmatprep.subr.mxu0 0.0
        %1492 = vmatpush1.xpose.msra.mxu0 0.0
        %1493 = vmatprep.subr.mxu0 0.0
        %1494 = vmatpush1.xpose.msra.mxu0 0.0
        %1495 = vmatprep.subr.mxu0 0.0
        %1496 = vmatpush1.xpose.msra.mxu0 0.0
        %1497 = vmatprep.subr.mxu0 0.0
        %1498 = vmatpush1.xpose.msra.mxu0 0.0
        %1499 = vmatprep.subr.mxu0 0.0
        %1500 = vmatpush1.xpose.msra.mxu0 0.0
        %1501 = vmatprep.subr.mxu0 0.0
        %1502 = vmatpush1.xpose.msra.mxu0 0.0
        %1503 = vmatprep.subr.mxu0 0.0
        %1504 = vmatpush1.xpose.msra.mxu0 0.0
        %1505 = vmatprep.subr.mxu0 0.0
        %1506 = vmatpush1.xpose.msra.mxu0 0.0
        %1507 = vmatprep.subr.mxu0 0.0
        %1508 = vmatpush1.xpose.msra.mxu0 0.0
        %1509 = vmatprep.subr.mxu0 0.0
        %1510 = vmatpush1.xpose.msra.mxu0 0.0
        %1511 = vmatprep.subr.mxu0 0.0
        %1512 = vmatpush1.xpose.msra.mxu0 0.0
        %1513 = vmatprep.subr.mxu0 0.0
        %1514 = vmatpush1.xpose.msra.mxu0 0.0
        %1515 = vmatprep.subr.mxu0 0.0
        %1516 = vmatpush1.xpose.msra.mxu0 0.0
        %1517 = vmatprep.subr.mxu0 0.0
        %1518 = vmatpush1.xpose.msra.mxu0 0.0
        %1519 = vmatprep.subr.mxu0 0.0
        %1520 = vmatpush1.xpose.msra.mxu0 0.0
        %1521 = vmatprep.subr.mxu0 0.0
        %1522 = vmatpush1.xpose.msra.mxu0 0.0
        %1523 = vmatprep.subr.mxu0 0.0
        %1524 = vmatpush1.xpose.msra.mxu0 0.0
        %1525 = vmatprep.subr.mxu0 0.0
        %1526 = vmatpush1.xpose.msra.mxu0 0.0
        %1527 = vmatprep.subr.mxu0 0.0
        %1528 = vmatpush1.xpose.msra.mxu0 0.0
        %1529 = vmatprep.subr.mxu0 0.0
        %1530 = vmatpush1.xpose.msra.mxu0 0.0
        %1531 = vmatprep.subr.mxu0 0.0
        %1532 = vmatpush1.xpose.msra.mxu0 0.0
        %1533 = vmatprep.subr.mxu0 0.0
        %1534 = vmatpush1.xpose.msra.mxu0 0.0
        %1535 = vmatprep.subr.mxu0 0.0
        %1536 = vmatpush1.xpose.msra.mxu0 0.0
        %1537 = vmatprep.subr.mxu0 0.0
        %1538 = vmatpush1.xpose.msra.mxu0 0.0
        %1539 = vmatprep.subr.mxu0 0.0
        %1540 = vmatpush1.xpose.msra.mxu0 0.0
        %1541 = vmatprep.subr.mxu0 0.0
        %1542 = vmatpush1.xpose.msra.mxu0 0.0
        %1543 = vmatprep.subr.mxu0 0.0
        %1544 = vmatpush1.xpose.msra.mxu0 0.0
        %1545 = vmatprep.subr.mxu0 0.0
        %1546 = vmatpush1.xpose.msra.mxu0 0.0
        %1547 = vmatprep.subr.mxu0 0.0
        %1548 = vmatpush1.xpose.msra.mxu0 0.0
        %1549 = vmatprep.subr.mxu0 0.0
        %1550 = vmatpush1.xpose.msra.mxu0 0.0
        %1551 = vmatprep.mubr.f32.mxu0 0.0
        %1552 = vmatmul.mubr.f32.gmra.mrb[0].mxu0 %v1482
        %v1553 = vpop.f32.mrb[0].mxu0
        %v1554 = vadd.f32 0.0, %v1553
        %v1555 = vpop.f32.mrb[0].mxu0
        %1556 = vdwg.mxu0
        %v1558 = vsel %vm1328, %v1319, 0
        %v1561 = vsel %vm1328, %v1323, 0
        %1563 = vmatprep.subr.mxu0 0.0
        %1564 = vmatpush1.xpose.msra.mxu0 %v1561
        %1565 = vmatprep.subr.mxu0 0.0
        %1566 = vmatpush1.xpose.msra.mxu0 0.0
        %1567 = vmatprep.subr.mxu0 0.0
        %1568 = vmatpush1.xpose.msra.mxu0 0.0
        %1569 = vmatprep.subr.mxu0 0.0
        %1570 = vmatpush1.xpose.msra.mxu0 0.0
        %1571 = vmatprep.subr.mxu0 0.0
        %1572 = vmatpush1.xpose.msra.mxu0 0.0
        %1573 = vmatprep.subr.mxu0 0.0
        %1574 = vmatpush1.xpose.msra.mxu0 0.0
        %1575 = vmatprep.subr.mxu0 0.0
        %1576 = vmatpush1.xpose.msra.mxu0 0.0
        %1577 = vmatprep.subr.mxu0 0.0
        %1578 = vmatpush1.xpose.msra.mxu0 0.0
        %1579 = vmatprep.subr.mxu0 0.0
        %1580 = vmatpush1.xpose.msra.mxu0 0.0
        %1581 = vmatprep.subr.mxu0 0.0
        %1582 = vmatpush1.xpose.msra.mxu0 0.0
        %1583 = vmatprep.subr.mxu0 0.0
        %1584 = vmatpush1.xpose.msra.mxu0 0.0
        %1585 = vmatprep.subr.mxu0 0.0
        %1586 = vmatpush1.xpose.msra.mxu0 0.0
        %1587 = vmatprep.subr.mxu0 0.0
        %1588 = vmatpush1.xpose.msra.mxu0 0.0
        %1589 = vmatprep.subr.mxu0 0.0
        %1590 = vmatpush1.xpose.msra.mxu0 0.0
        %1591 = vmatprep.subr.mxu0 0.0
        %1592 = vmatpush1.xpose.msra.mxu0 0.0
        %1593 = vmatprep.subr.mxu0 0.0
        %1594 = vmatpush1.xpose.msra.mxu0 0.0
        %1595 = vmatprep.subr.mxu0 0.0
        %1596 = vmatpush1.xpose.msra.mxu0 0.0
        %1597 = vmatprep.subr.mxu0 0.0
        %1598 = vmatpush1.xpose.msra.mxu0 0.0
        %1599 = vmatprep.subr.mxu0 0.0
        %1600 = vmatpush1.xpose.msra.mxu0 0.0
        %1601 = vmatprep.subr.mxu0 0.0
        %1602 = vmatpush1.xpose.msra.mxu0 0.0
        %1603 = vmatprep.subr.mxu0 0.0
        %1604 = vmatpush1.xpose.msra.mxu0 0.0
        %1605 = vmatprep.subr.mxu0 0.0
        %1606 = vmatpush1.xpose.msra.mxu0 0.0
        %1607 = vmatprep.subr.mxu0 0.0
        %1608 = vmatpush1.xpose.msra.mxu0 0.0
        %1609 = vmatprep.subr.mxu0 0.0
        %1610 = vmatpush1.xpose.msra.mxu0 0.0
        %1611 = vmatprep.subr.mxu0 0.0
        %1612 = vmatpush1.xpose.msra.mxu0 0.0
        %1613 = vmatprep.subr.mxu0 0.0
        %1614 = vmatpush1.xpose.msra.mxu0 0.0
        %1615 = vmatprep.subr.mxu0 0.0
        %1616 = vmatpush1.xpose.msra.mxu0 0.0
        %1617 = vmatprep.subr.mxu0 0.0
        %1618 = vmatpush1.xpose.msra.mxu0 0.0
        %1619 = vmatprep.subr.mxu0 0.0
        %1620 = vmatpush1.xpose.msra.mxu0 0.0
        %1621 = vmatprep.subr.mxu0 0.0
        %1622 = vmatpush1.xpose.msra.mxu0 0.0
        %1623 = vmatprep.subr.mxu0 0.0
        %1624 = vmatpush1.xpose.msra.mxu0 0.0
        %1625 = vmatprep.subr.mxu0 0.0
        %1626 = vmatpush1.xpose.msra.mxu0 0.0
        %1627 = vmatprep.mubr.f32.mxu0 0.0
        %1628 = vmatmul.mubr.f32.gmra.mrb[0].mxu0 %v1558
        %v1629 = vpop.f32.mrb[0].mxu0
        %v1630 = vadd.f32 0.0, %v1629
        %v1631 = vpop.f32.mrb[0].mxu0
        %1632 = vdwg.mxu0
        %v1633 = vsel %vm1328, %v1402, -inf
        %1634 = vmax.xlane.f32.xlu0 %v1633
        %v1635 = vpop.xlane.xlu0 %1634
        %v1636 = vsel %vm1328, %v1478, -inf
        %1637 = vmax.xlane.f32.xlu0 %v1636
        %v1638 = vpop.xlane.xlu0 %1637
        %v1639 = vsel %vm1328, %v1554, -inf
        %1640 = vmax.xlane.f32.xlu0 %v1639
        %v1641 = vpop.xlane.xlu0 %1640
        %v1642 = vsel %vm1328, %v1630, -inf
        %1643 = vmax.xlane.f32.xlu0 %v1642
        %v1644 = vpop.xlane.xlu0 %1643
        %v1645 = vsub.f32 %v1402, %v1635
        %v1646 = vsub.f32 %v1478, %v1638
        %v1647 = vsub.f32 %v1554, %v1641
        %v1648 = vsub.f32 %v1630, %v1644
        %v1649 = vmul.f32 %v1645, 1.442695
        %v1650 = vpow.pop %v1649
        %v1651 = vmul.f32 %v1646, 1.442695
        %v1652 = vpow.pop %v1651
        %v1653 = vmul.f32 %v1647, 1.442695
        %v1654 = vpow.pop %v1653
        %v1655 = vmul.f32 %v1648, 1.442695
        %v1656 = vpow.pop %v1655
        %v1657 = vsel %vm1328, %v1650, 0.0
        %1658 = vadd.xlane.f32.xlu0 %v1657
        %v1659 = vpop.xlane.xlu0 %1658
        %v1660 = vsel %vm1328, %v1652, 0.0
        %1661 = vadd.xlane.f32.xlu0 %v1660
        %v1662 = vpop.xlane.xlu0 %1661
        %v1663 = vsel %vm1328, %v1654, 0.0
        %1664 = vadd.xlane.f32.xlu0 %v1663
        %v1665 = vpop.xlane.xlu0 %1664
        %v1666 = vsel %vm1328, %v1656, 0.0
        %1667 = vadd.xlane.f32.xlu0 %v1666
        %v1668 = vpop.xlane.xlu0 %1667
        %v1670 = vsel %vm1328, %v1650, 0
        %1672 = vmatprep.subr.mxu0 0.0
        %1673 = vmatpush1.msra.mxu0 %v1324
        %1674 = vmatprep.subr.mxu0 0.0
        %1675 = vmatpush1.msra.mxu0 0.0
        %1676 = vmatprep.subr.mxu0 0.0
        %1677 = vmatpush1.msra.mxu0 0.0
        %1678 = vmatprep.subr.mxu0 0.0
        %1679 = vmatpush1.msra.mxu0 0.0
        %1680 = vmatprep.subr.mxu0 0.0
        %1681 = vmatpush1.msra.mxu0 0.0
        %1682 = vmatprep.subr.mxu0 0.0
        %1683 = vmatpush1.msra.mxu0 0.0
        %1684 = vmatprep.subr.mxu0 0.0
        %1685 = vmatpush1.msra.mxu0 0.0
        %1686 = vmatprep.subr.mxu0 0.0
        %1687 = vmatpush1.msra.mxu0 0.0
        %1688 = vmatprep.subr.mxu0 0.0
        %1689 = vmatpush1.msra.mxu0 0.0
        %1690 = vmatprep.subr.mxu0 0.0
        %1691 = vmatpush1.msra.mxu0 0.0
        %1692 = vmatprep.subr.mxu0 0.0
        %1693 = vmatpush1.msra.mxu0 0.0
        %1694 = vmatprep.subr.mxu0 0.0
        %1695 = vmatpush1.msra.mxu0 0.0
        %1696 = vmatprep.subr.mxu0 0.0
        %1697 = vmatpush1.msra.mxu0 0.0
        %1698 = vmatprep.subr.mxu0 0.0
        %1699 = vmatpush1.msra.mxu0 0.0
        %1700 = vmatprep.subr.mxu0 0.0
        %1701 = vmatpush1.msra.mxu0 0.0
        %1702 = vmatprep.subr.mxu0 0.0
        %1703 = vmatpush1.msra.mxu0 0.0
        %1704 = vmatprep.subr.mxu0 0.0
        %1705 = vmatpush1.msra.mxu0 0.0
        %1706 = vmatprep.subr.mxu0 0.0
        %1707 = vmatpush1.msra.mxu0 0.0
        %1708 = vmatprep.subr.mxu0 0.0
        %1709 = vmatpush1.msra.mxu0 0.0
        %1710 = vmatprep.subr.mxu0 0.0
        %1711 = vmatpush1.msra.mxu0 0.0
        %1712 = vmatprep.subr.mxu0 0.0
        %1713 = vmatpush1.msra.mxu0 0.0
        %1714 = vmatprep.subr.mxu0 0.0
        %1715 = vmatpush1.msra.mxu0 0.0
        %1716 = vmatprep.subr.mxu0 0.0
        %1717 = vmatpush1.msra.mxu0 0.0
        %1718 = vmatprep.subr.mxu0 0.0
        %1719 = vmatpush1.msra.mxu0 0.0
        %1720 = vmatprep.subr.mxu0 0.0
        %1721 = vmatpush1.msra.mxu0 0.0
        %1722 = vmatprep.subr.mxu0 0.0
        %1723 = vmatpush1.msra.mxu0 0.0
        %1724 = vmatprep.subr.mxu0 0.0
        %1725 = vmatpush1.msra.mxu0 0.0
        %1726 = vmatprep.subr.mxu0 0.0
        %1727 = vmatpush1.msra.mxu0 0.0
        %1728 = vmatprep.subr.mxu0 0.0
        %1729 = vmatpush1.msra.mxu0 0.0
        %1730 = vmatprep.subr.mxu0 0.0
        %1731 = vmatpush1.msra.mxu0 0.0
        %1732 = vmatprep.subr.mxu0 0.0
        %1733 = vmatpush1.msra.mxu0 0.0
        %1734 = vmatprep.subr.mxu0 0.0
        %1735 = vmatpush1.msra.mxu0 0.0
        %1736 = vmatprep.mubr.f32.mxu0 0.0
        %1737 = vmatmul.mubr.f32.gmra.mrb[0].mxu0 %v1670
        %v1738 = vpop.f32.mrb[0].mxu0
        %v1739 = vadd.f32 0.0, %v1738
        %v1740 = vpop.f32.mrb[0].mxu0
        %1741 = vdwg.mxu0
        %v1743 = vsel %vm1328, %v1652, 0
        %1745 = vmatprep.subr.mxu0 0.0
        %1746 = vmatpush1.msra.mxu0 %v1325
        %1747 = vmatprep.subr.mxu0 0.0
        %1748 = vmatpush1.msra.mxu0 0.0
        %1749 = vmatprep.subr.mxu0 0.0
        %1750 = vmatpush1.msra.mxu0 0.0
        %1751 = vmatprep.subr.mxu0 0.0
        %1752 = vmatpush1.msra.mxu0 0.0
        %1753 = vmatprep.subr.mxu0 0.0
        %1754 = vmatpush1.msra.mxu0 0.0
        %1755 = vmatprep.subr.mxu0 0.0
        %1756 = vmatpush1.msra.mxu0 0.0
        %1757 = vmatprep.subr.mxu0 0.0
        %1758 = vmatpush1.msra.mxu0 0.0
        %1759 = vmatprep.subr.mxu0 0.0
        %1760 = vmatpush1.msra.mxu0 0.0
        %1761 = vmatprep.subr.mxu0 0.0
        %1762 = vmatpush1.msra.mxu0 0.0
        %1763 = vmatprep.subr.mxu0 0.0
        %1764 = vmatpush1.msra.mxu0 0.0
        %1765 = vmatprep.subr.mxu0 0.0
        %1766 = vmatpush1.msra.mxu0 0.0
        %1767 = vmatprep.subr.mxu0 0.0
        %1768 = vmatpush1.msra.mxu0 0.0
        %1769 = vmatprep.subr.mxu0 0.0
        %1770 = vmatpush1.msra.mxu0 0.0
        %1771 = vmatprep.subr.mxu0 0.0
        %1772 = vmatpush1.msra.mxu0 0.0
        %1773 = vmatprep.subr.mxu0 0.0
        %1774 = vmatpush1.msra.mxu0 0.0
        %1775 = vmatprep.subr.mxu0 0.0
        %1776 = vmatpush1.msra.mxu0 0.0
        %1777 = vmatprep.subr.mxu0 0.0
        %1778 = vmatpush1.msra.mxu0 0.0
        %1779 = vmatprep.subr.mxu0 0.0
        %1780 = vmatpush1.msra.mxu0 0.0
        %1781 = vmatprep.subr.mxu0 0.0
        %1782 = vmatpush1.msra.mxu0 0.0
        %1783 = vmatprep.subr.mxu0 0.0
        %1784 = vmatpush1.msra.mxu0 0.0
        %1785 = vmatprep.subr.mxu0 0.0
        %1786 = vmatpush1.msra.mxu0 0.0
        %1787 = vmatprep.subr.mxu0 0.0
        %1788 = vmatpush1.msra.mxu0 0.0
        %1789 = vmatprep.subr.mxu0 0.0
        %1790 = vmatpush1.msra.mxu0 0.0
        %1791 = vmatprep.subr.mxu0 0.0
        %1792 = vmatpush1.msra.mxu0 0.0
        %1793 = vmatprep.subr.mxu0 0.0
        %1794 = vmatpush1.msra.mxu0 0.0
        %1795 = vmatprep.subr.mxu0 0.0
        %1796 = vmatpush1.msra.mxu0 0.0
        %1797 = vmatprep.subr.mxu0 0.0
        %1798 = vmatpush1.msra.mxu0 0.0
        %1799 = vmatprep.subr.mxu0 0.0
        %1800 = vmatpush1.msra.mxu0 0.0
        %1801 = vmatprep.subr.mxu0 0.0
        %1802 = vmatpush1.msra.mxu0 0.0
        %1803 = vmatprep.subr.mxu0 0.0
        %1804 = vmatpush1.msra.mxu0 0.0
        %1805 = vmatprep.subr.mxu0 0.0
        %1806 = vmatpush1.msra.mxu0 0.0
        %1807 = vmatprep.subr.mxu0 0.0
        %1808 = vmatpush1.msra.mxu0 0.0
        %1809 = vmatprep.mubr.f32.mxu0 0.0
        %1810 = vmatmul.mubr.f32.gmra.mrb[0].mxu0 %v1743
        %v1811 = vpop.f32.mrb[0].mxu0
        %v1812 = vadd.f32 0.0, %v1811
        %v1813 = vpop.f32.mrb[0].mxu0
        %1814 = vdwg.mxu0
        %v1816 = vsel %vm1328, %v1654, 0
        %1818 = vmatprep.subr.mxu0 0.0
        %1819 = vmatpush1.msra.mxu0 %v1326
        %1820 = vmatprep.subr.mxu0 0.0
        %1821 = vmatpush1.msra.mxu0 0.0
        %1822 = vmatprep.subr.mxu0 0.0
        %1823 = vmatpush1.msra.mxu0 0.0
        %1824 = vmatprep.subr.mxu0 0.0
        %1825 = vmatpush1.msra.mxu0 0.0
        %1826 = vmatprep.subr.mxu0 0.0
        %1827 = vmatpush1.msra.mxu0 0.0
        %1828 = vmatprep.subr.mxu0 0.0
        %1829 = vmatpush1.msra.mxu0 0.0
        %1830 = vmatprep.subr.mxu0 0.0
        %1831 = vmatpush1.msra.mxu0 0.0
        %1832 = vmatprep.subr.mxu0 0.0
        %1833 = vmatpush1.msra.mxu0 0.0
        %1834 = vmatprep.subr.mxu0 0.0
        %1835 = vmatpush1.msra.mxu0 0.0
        %1836 = vmatprep.subr.mxu0 0.0
        %1837 = vmatpush1.msra.mxu0 0.0
        %1838 = vmatprep.subr.mxu0 0.0
        %1839 = vmatpush1.msra.mxu0 0.0
        %1840 = vmatprep.subr.mxu0 0.0
        %1841 = vmatpush1.msra.mxu0 0.0
        %1842 = vmatprep.subr.mxu0 0.0
        %1843 = vmatpush1.msra.mxu0 0.0
        %1844 = vmatprep.subr.mxu0 0.0
        %1845 = vmatpush1.msra.mxu0 0.0
        %1846 = vmatprep.subr.mxu0 0.0
        %1847 = vmatpush1.msra.mxu0 0.0
        %1848 = vmatprep.subr.mxu0 0.0
        %1849 = vmatpush1.msra.mxu0 0.0
        %1850 = vmatprep.subr.mxu0 0.0
        %1851 = vmatpush1.msra.mxu0 0.0
        %1852 = vmatprep.subr.mxu0 0.0
        %1853 = vmatpush1.msra.mxu0 0.0
        %1854 = vmatprep.subr.mxu0 0.0
        %1855 = vmatpush1.msra.mxu0 0.0
        %1856 = vmatprep.subr.mxu0 0.0
        %1857 = vmatpush1.msra.mxu0 0.0
        %1858 = vmatprep.subr.mxu0 0.0
        %1859 = vmatpush1.msra.mxu0 0.0
        %1860 = vmatprep.subr.mxu0 0.0
        %1861 = vmatpush1.msra.mxu0 0.0
        %1862 = vmatprep.subr.mxu0 0.0
        %1863 = vmatpush1.msra.mxu0 0.0
        %1864 = vmatprep.subr.mxu0 0.0
        %1865 = vmatpush1.msra.mxu0 0.0
        %1866 = vmatprep.subr.mxu0 0.0
        %1867 = vmatpush1.msra.mxu0 0.0
        %1868 = vmatprep.subr.mxu0 0.0
        %1869 = vmatpush1.msra.mxu0 0.0
        %1870 = vmatprep.subr.mxu0 0.0
        %1871 = vmatpush1.msra.mxu0 0.0
        %1872 = vmatprep.subr.mxu0 0.0
        %1873 = vmatpush1.msra.mxu0 0.0
        %1874 = vmatprep.subr.mxu0 0.0
        %1875 = vmatpush1.msra.mxu0 0.0
        %1876 = vmatprep.subr.mxu0 0.0
        %1877 = vmatpush1.msra.mxu0 0.0
        %1878 = vmatprep.subr.mxu0 0.0
        %1879 = vmatpush1.msra.mxu0 0.0
        %1880 = vmatprep.subr.mxu0 0.0
        %1881 = vmatpush1.msra.mxu0 0.0
        %1882 = vmatprep.mubr.f32.mxu0 0.0
        %1883 = vmatmul.mubr.f32.gmra.mrb[0].mxu0 %v1816
        %v1884 = vpop.f32.mrb[0].mxu0
        %v1885 = vadd.f32 0.0, %v1884
        %v1886 = vpop.f32.mrb[0].mxu0
        %1887 = vdwg.mxu0
        %v1889 = vsel %vm1328, %v1656, 0
        %1891 = vmatprep.subr.mxu0 0.0
        %1892 = vmatpush1.msra.mxu0 %v1327
        %1893 = vmatprep.subr.mxu0 0.0
        %1894 = vmatpush1.msra.mxu0 0.0
        %1895 = vmatprep.subr.mxu0 0.0
        %1896 = vmatpush1.msra.mxu0 0.0
        %1897 = vmatprep.subr.mxu0 0.0
        %1898 = vmatpush1.msra.mxu0 0.0
        %1899 = vmatprep.subr.mxu0 0.0
        %1900 = vmatpush1.msra.mxu0 0.0
        %1901 = vmatprep.subr.mxu0 0.0
        %1902 = vmatpush1.msra.mxu0 0.0
        %1903 = vmatprep.subr.mxu0 0.0
        %1904 = vmatpush1.msra.mxu0 0.0
        %1905 = vmatprep.subr.mxu0 0.0
        %1906 = vmatpush1.msra.mxu0 0.0
        %1907 = vmatprep.subr.mxu0 0.0
        %1908 = vmatpush1.msra.mxu0 0.0
        %1909 = vmatprep.subr.mxu0 0.0
        %1910 = vmatpush1.msra.mxu0 0.0
        %1911 = vmatprep.subr.mxu0 0.0
        %1912 = vmatpush1.msra.mxu0 0.0
        %1913 = vmatprep.subr.mxu0 0.0
        %1914 = vmatpush1.msra.mxu0 0.0
        %1915 = vmatprep.subr.mxu0 0.0
        %1916 = vmatpush1.msra.mxu0 0.0
        %1917 = vmatprep.subr.mxu0 0.0
        %1918 = vmatpush1.msra.mxu0 0.0
        %1919 = vmatprep.subr.mxu0 0.0
        %1920 = vmatpush1.msra.mxu0 0.0
        %1921 = vmatprep.subr.mxu0 0.0
        %1922 = vmatpush1.msra.mxu0 0.0
        %1923 = vmatprep.subr.mxu0 0.0
        %1924 = vmatpush1.msra.mxu0 0.0
        %1925 = vmatprep.subr.mxu0 0.0
        %1926 = vmatpush1.msra.mxu0 0.0
        %1927 = vmatprep.subr.mxu0 0.0
        %1928 = vmatpush1.msra.mxu0 0.0
        %1929 = vmatprep.subr.mxu0 0.0
        %1930 = vmatpush1.msra.mxu0 0.0
        %1931 = vmatprep.subr.mxu0 0.0
        %1932 = vmatpush1.msra.mxu0 0.0
        %1933 = vmatprep.subr.mxu0 0.0
        %1934 = vmatpush1.msra.mxu0 0.0
        %1935 = vmatprep.subr.mxu0 0.0
        %1936 = vmatpush1.msra.mxu0 0.0
        %1937 = vmatprep.subr.mxu0 0.0
        %1938 = vmatpush1.msra.mxu0 0.0
        %1939 = vmatprep.subr.mxu0 0.0
        %1940 = vmatpush1.msra.mxu0 0.0
        %1941 = vmatprep.subr.mxu0 0.0
        %1942 = vmatpush1.msra.mxu0 0.0
        %1943 = vmatprep.subr.mxu0 0.0
        %1944 = vmatpush1.msra.mxu0 0.0
        %1945 = vmatprep.subr.mxu0 0.0
        %1946 = vmatpush1.msra.mxu0 0.0
        %1947 = vmatprep.subr.mxu0 0.0
        %1948 = vmatpush1.msra.mxu0 0.0
        %1949 = vmatprep.subr.mxu0 0.0
        %1950 = vmatpush1.msra.mxu0 0.0
        %1951 = vmatprep.subr.mxu0 0.0
        %1952 = vmatpush1.msra.mxu0 0.0
        %1953 = vmatprep.subr.mxu0 0.0
        %1954 = vmatpush1.msra.mxu0 0.0
        %1955 = vmatprep.mubr.f32.mxu0 0.0
        %1956 = vmatmul.mubr.f32.gmra.mrb[0].mxu0 %v1889
        %v1957 = vpop.f32.mrb[0].mxu0
        %v1958 = vadd.f32 0.0, %v1957
        %v1959 = vpop.f32.mrb[0].mxu0
        %1960 = vdwg.mxu0
        %v1961 = vrcp.pop %v1659
        %v1962 = vrcp.pop %v1662
        %v1963 = vrcp.pop %v1665
        %v1964 = vrcp.pop %v1668
        %v1965 = vmul.f32 %v1739, %v1961
        %v1966 = vmul.f32 %v1812, %v1962
        %v1967 = vmul.f32 %v1885, %v1963
        %v1968 = vmul.f32 %v1958, %v1964
        %v1969 = vcombine.low %v1965, %v1967
        %v1970 = vcombine.high %v1965, %v1967
        %v1972 = vunpack.c.l.s4 1983009808
        %v1973 = vunpack.c.0.s8 %v1972
        %v1974 = vlaneseq
        %v1975 = vshrl.u32 %v1974, 7
        %v1976 = vsub.s32 %v1973, %v1975
        %v1977 = vrot.slane %v1969, %v1976
        %v1979 = vunpack.c.l.s4 1983009808
        %v1980 = vunpack.c.0.s8 %v1979
        %v1981 = vlaneseq
        %v1982 = vshrl.u32 %v1981, 7
        %v1983 = vsub.s32 %v1980, %v1982
        %v1984 = vrot.slane %v1970, %v1983
        %v1985 = vcombine.low %v1966, %v1968
        %v1986 = vcombine.high %v1966, %v1968
        %v1988 = vunpack.c.l.s4 1983009808
        %v1989 = vunpack.c.0.s8 %v1988
        %v1990 = vlaneseq
        %v1991 = vshrl.u32 %v1990, 7
        %v1992 = vsub.s32 %v1989, %v1991
        %v1993 = vrot.slane %v1985, %v1992
        %v1995 = vunpack.c.l.s4 1983009808
        %v1996 = vunpack.c.0.s8 %v1995
        %v1997 = vlaneseq
        %v1998 = vshrl.u32 %v1997, 7
        %v1999 = vsub.s32 %v1996, %v1998
        %v2000 = vrot.slane %v1986, %v1999
        %v2001 = vcombine.low %v1977, %v1993
        %v2002 = vcombine.high %v1977, %v1993
        %v2004 = vunpack.c.l.s4 1934713408
        %v2005 = vunpack.c.0.s8 %v2004
        %v2006 = vlaneseq
        %v2007 = vshrl.u32 %v2006, 7
        %v2008 = vsub.s32 %v2005, %v2007
        %v2009 = vrot.slane %v2001, %v2008
        %v2011 = vunpack.c.l.s4 1934713408
        %v2012 = vunpack.c.0.s8 %v2011
        %v2013 = vlaneseq
        %v2014 = vshrl.u32 %v2013, 7
        %v2015 = vsub.s32 %v2012, %v2014
        %v2016 = vrot.slane %v2002, %v2015
        %v2017 = vcombine.low %v1984, %v2000
        %v2018 = vcombine.high %v1984, %v2000
        %v2020 = vunpack.c.l.s4 1934713408
        %v2021 = vunpack.c.0.s8 %v2020
        %v2022 = vlaneseq
        %v2023 = vshrl.u32 %v2022, 7
        %v2024 = vsub.s32 %v2021, %v2023
        %v2025 = vrot.slane %v2017, %v2024
        %v2027 = vunpack.c.l.s4 1934713408
        %v2028 = vunpack.c.0.s8 %v2027
        %v2029 = vlaneseq
        %v2030 = vshrl.u32 %v2029, 7
        %v2031 = vsub.s32 %v2028, %v2030
        %v2032 = vrot.slane %v2018, %v2031
        %v2033 = vcombine.high %v2009, 0.0
        %v2034 = vcombine.high %v2016, 0.0
        %v2035 = vcombine.high %v2025, 0.0
        %v2036 = vcombine.high %v2032, 0.0
        %v2037 = vcombine.low %v2009, %v2016
        %v2039 = vunpack.c.l.s4 1983009808
        %v2040 = vunpack.c.0.s8 %v2039
        %v2041 = vlaneseq
        %v2042 = vshrl.u32 %v2041, 7
        %v2043 = vsub.s32 %v2040, %v2042
        %v2044 = vrot.slane %v2037, %v2043
        %v2045 = vcombine.low %v2033, %v2034
        %v2047 = vunpack.c.l.s4 1983009808
        %v2048 = vunpack.c.0.s8 %v2047
        %v2049 = vlaneseq
        %v2050 = vshrl.u32 %v2049, 7
        %v2051 = vsub.s32 %v2048, %v2050
        %v2052 = vrot.slane %v2045, %v2051
        %v2053 = vcombine.low %v2025, %v2032
        %v2055 = vunpack.c.l.s4 1983009808
        %v2056 = vunpack.c.0.s8 %v2055
        %v2057 = vlaneseq
        %v2058 = vshrl.u32 %v2057, 7
        %v2059 = vsub.s32 %v2056, %v2058
        %v2060 = vrot.slane %v2053, %v2059
        %v2061 = vcombine.low %v2035, %v2036
        %v2063 = vunpack.c.l.s4 1983009808
        %v2064 = vunpack.c.0.s8 %v2063
        %v2065 = vlaneseq
        %v2066 = vshrl.u32 %v2065, 7
        %v2067 = vsub.s32 %v2064, %v2066
        %v2068 = vrot.slane %v2061, %v2067
        %v2069 = vcombine.low %v2044, %v2052
        %v2070 = vcombine.high %v2044, %v2052
        %v2072 = vunpack.c.l.s4 1934713408
        %v2073 = vunpack.c.0.s8 %v2072
        %v2074 = vlaneseq
        %v2075 = vshrl.u32 %v2074, 7
        %v2076 = vsub.s32 %v2073, %v2075
        %v2077 = vrot.slane %v2069, %v2076
        %v2079 = vunpack.c.l.s4 1934713408
        %v2080 = vunpack.c.0.s8 %v2079
        %v2081 = vlaneseq
        %v2082 = vshrl.u32 %v2081, 7
        %v2083 = vsub.s32 %v2080, %v2082
        %v2084 = vrot.slane %v2070, %v2083
        %v2085 = vcombine.low %v2060, %v2068
        %v2086 = vcombine.high %v2060, %v2068
        %v2088 = vunpack.c.l.s4 1934713408
        %v2089 = vunpack.c.0.s8 %v2088
        %v2090 = vlaneseq
        %v2091 = vshrl.u32 %v2090, 7
        %v2092 = vsub.s32 %v2089, %v2091
        %v2093 = vrot.slane %v2085, %v2092
        %v2095 = vunpack.c.l.s4 1934713408
        %v2096 = vunpack.c.0.s8 %v2095
        %v2097 = vlaneseq
        %v2098 = vshrl.u32 %v2097, 7
        %v2099 = vsub.s32 %v2096, %v2098
        %v2100 = vrot.slane %v2086, %v2099
        %v2101 = vcombine.low %v2077, %v2093
        %v2102 = vcombine.high %v2077, %v2093
        %v2103 = vcombine.low %v2084, %v2100
        %v2104 = vcombine.high %v2084, %v2100
        %2106 = vrot.lane.b32.xlu0 %v2102, 8
        %v2107 = vpop.permute.xlu0 %2106
        %2110 = vrot.lane.b32.xlu0 %v2103, 16
        %v2111 = vpop.permute.xlu0 %2110
        %2114 = vrot.lane.b32.xlu0 %v2104, 24
        %v2115 = vpop.permute.xlu0 %2114
        %v2117 = vsel %vm1328, %v2101, %v2107
        %vm2118 = vcmask 130048
        %v2119 = vsel %vm2118, %v2117, %v2111
        %vm2120 = vcmask 195584
        %v2121 = vsel %vm2120, %v2119, %v2115
        %v2122 = vld [vmem:[#allocation18] sm:$0xff]
        %v2123 = vld [vmem:[#allocation18 + $0x8] sm:$0xff]
        %v2124 = vld [vmem:[#allocation18 + $0x10] sm:$0xff]
        %v2125 = vld [vmem:[#allocation18 + $0x18] sm:$0xff]
        %v2126 = vld [vmem:[#allocation19] sm:$0x1]
        %v2128 = vlaneseq
        %v2129 = vshrl.u32 %v2128, 7
        %v2130 = vsub.s32 0, %v2129
        %v2131 = vrot.slane %v2126, %v2130
        %v2134 = vsel %vm1100, %v2121, 0
        %2136 = vmatprep.subr.mxu0 0.0
        %2137 = vmatpush1.msra.mxu0 %v2122
        %2138 = vmatprep.subr.mxu0 0.0
        %2139 = vmatpush1.msra.mxu0 %v2123
        %2140 = vmatprep.subr.mxu0 0.0
        %2141 = vmatpush1.msra.mxu0 %v2124
        %2142 = vmatprep.subr.mxu0 0.0
        %2143 = vmatpush1.msra.mxu0 %v2125
        %2144 = vmatprep.subr.mxu0 0.0
        %2145 = vmatpush1.msra.mxu0 0.0
        %2146 = vmatprep.subr.mxu0 0.0
        %2147 = vmatpush1.msra.mxu0 0.0
        %2148 = vmatprep.subr.mxu0 0.0
        %2149 = vmatpush1.msra.mxu0 0.0
        %2150 = vmatprep.subr.mxu0 0.0
        %2151 = vmatpush1.msra.mxu0 0.0
        %2152 = vmatprep.subr.mxu0 0.0
        %2153 = vmatpush1.msra.mxu0 0.0
        %2154 = vmatprep.subr.mxu0 0.0
        %2155 = vmatpush1.msra.mxu0 0.0
        %2156 = vmatprep.subr.mxu0 0.0
        %2157 = vmatpush1.msra.mxu0 0.0
        %2158 = vmatprep.subr.mxu0 0.0
        %2159 = vmatpush1.msra.mxu0 0.0
        %2160 = vmatprep.subr.mxu0 0.0
        %2161 = vmatpush1.msra.mxu0 0.0
        %2162 = vmatprep.subr.mxu0 0.0
        %2163 = vmatpush1.msra.mxu0 0.0
        %2164 = vmatprep.subr.mxu0 0.0
        %2165 = vmatpush1.msra.mxu0 0.0
        %2166 = vmatprep.subr.mxu0 0.0
        %2167 = vmatpush1.msra.mxu0 0.0
        %2168 = vmatprep.subr.mxu0 0.0
        %2169 = vmatpush1.msra.mxu0 0.0
        %2170 = vmatprep.subr.mxu0 0.0
        %2171 = vmatpush1.msra.mxu0 0.0
        %2172 = vmatprep.subr.mxu0 0.0
        %2173 = vmatpush1.msra.mxu0 0.0
        %2174 = vmatprep.subr.mxu0 0.0
        %2175 = vmatpush1.msra.mxu0 0.0
        %2176 = vmatprep.subr.mxu0 0.0
        %2177 = vmatpush1.msra.mxu0 0.0
        %2178 = vmatprep.subr.mxu0 0.0
        %2179 = vmatpush1.msra.mxu0 0.0
        %2180 = vmatprep.subr.mxu0 0.0
        %2181 = vmatpush1.msra.mxu0 0.0
        %2182 = vmatprep.subr.mxu0 0.0
        %2183 = vmatpush1.msra.mxu0 0.0
        %2184 = vmatprep.subr.mxu0 0.0
        %2185 = vmatpush1.msra.mxu0 0.0
        %2186 = vmatprep.subr.mxu0 0.0
        %2187 = vmatpush1.msra.mxu0 0.0
        %2188 = vmatprep.subr.mxu0 0.0
        %2189 = vmatpush1.msra.mxu0 0.0
        %2190 = vmatprep.subr.mxu0 0.0
        %2191 = vmatpush1.msra.mxu0 0.0
        %2192 = vmatprep.subr.mxu0 0.0
        %2193 = vmatpush1.msra.mxu0 0.0
        %2194 = vmatprep.subr.mxu0 0.0
        %2195 = vmatpush1.msra.mxu0 0.0
        %2196 = vmatprep.subr.mxu0 0.0
        %2197 = vmatpush1.msra.mxu0 0.0
        %2198 = vmatprep.subr.mxu0 0.0
        %2199 = vmatpush1.msra.mxu0 0.0
        %2200 = vmatprep.mubr.f32.mxu0 0.0
        %2201 = vmatmul.mubr.f32.gmra.mrb[0].mxu0 %v2134
        %v2202 = vpop.f32.mrb[0].mxu0
        %v2203 = vadd.f32 %v2131, %v2202
        %v2204 = vpop.f32.mrb[0].mxu0
        %2205 = vdwg.mxu0
        %v2206 = vadd.f32 %v2203, %v616
        %v2207 = vsel %vm1100, %v2206, 0.0
        %2208 = vadd.xlane.f32.xlu0 %v2207
        %v2209 = vpop.xlane.xlu0 %2208
        %v2210 = vrcp.pop 32.0
        %v2211 = vmul.f32 %v2209, %v2210
        %v2212 = vsub.f32 %v2206, %v2211
        %v2213 = vmul.f32 %v2212, %v2212
        %v2214 = vsel %vm1100, %v2213, 0.0
        %2215 = vadd.xlane.f32.xlu0 %v2214
        %v2216 = vpop.xlane.xlu0 %2215
        %v2217 = vmul.f32 %v2216, %v2210
        %v2218 = vadd.f32 %v2217, 1e-05
        %v2219 = vrsqrt.pop %v2218
        %v2220 = vmul.f32 %v2212, %v2219
        %v2221 = vld [vmem:[#allocation21] sm:$0x1]
        %v2223 = vlaneseq
        %v2224 = vshrl.u32 %v2223, 7
        %v2225 = vsub.s32 0, %v2224
        %v2226 = vrot.slane %v2221, %v2225
        %v2228 = vmul.f32 %v2220, %v2226
        %v2229 = vld [vmem:[#allocation22] sm:$0x1]
        %v2231 = vlaneseq
        %v2232 = vshrl.u32 %v2231, 7
        %v2233 = vsub.s32 0, %v2232
        %v2234 = vrot.slane %v2229, %v2233
        %v2236 = vadd.f32 %v2228, %v2234
        %2237 = vst.msk [vmem:[%s615] sm:$0xff] %vm1100, %v2236
        %s2238 = sand.u32 %s323, 1
        %s2239 = scalar_lea.sflag [#allocation6], %s2238
        %s2240 = sand.u32 %s323, 1
        %s2241 = smul.addr %s2240, 8
        %s2242 = scalar_lea.vmem [#allocation24], %s2241
        // Predicated region
        $region121: #{tpu_custom_call.1} parent=67 // pred_check
          %p2243 = pneg %p333
        $region122: #{tpu_custom_call.1} parent=67 // pred_check_branch
          %2245 = sbr.rel (%p2243) target = $region124
        $region123: #{tpu_custom_call.1} parent=67 // pred_region
          %s2247 = ssub.s32 128, 128
          %2248 = vsyncadd %s2239, %s2247
          %s2249 = sadd.s32 %s42, %s41
          %s2250 = smul.addr %s2249, 128
          %s2251 = scalar_lea.hbm %s12, %s2250
          %s2253 = sshll.u32 %s2242, 4
          %s2254 = int_to_ptr.vmem [resolvable:$true] %s2253
          %2256 = dma.vmem_to_hbm [thread:$0]  %s2254, 128, %s2251, %s2239
        $region124: #{tpu_custom_call.1} parent=67 // pred_fallthru
          _
      $region68: #{tpu_custom_call.1} parent=5 // pred_fallthru
        _
      %p2257 = scmp.le.s32.totalorder 2, %s32
      // Predicated region
      $region125: #{tpu_custom_call.1} parent=5 // pred_check
        %p2258 = pneg %p2257
      $region126: #{tpu_custom_call.1} parent=5 // pred_check_branch
        %2260 = sbr.rel (%p2258) target = $region128
      $region127: #{tpu_custom_call.1} parent=5 // pred_region
        %s2261 = ssub.s32 %s32, 2
        // Predicated region
        $region129: #{tpu_custom_call.1} parent=127 // pred_check
          %p2262 = pneg %p339
        $region130: #{tpu_custom_call.1} parent=127 // pred_check_branch
          %2264 = sbr.rel (%p2262) target = $region132
        $region131: #{tpu_custom_call.1} parent=127 // pred_region
          %s2265 = sand.u32 %s324, 1
          %s2266 = scalar_lea.sflag [#allocation6], %s2265
          %s2267 = sand.u32 %s324, 1
          %s2268 = smul.addr %s2267, 8
          %s2269 = scalar_lea.vmem [#allocation24], %s2268
          %2270 = dma.done %s2266, 128
        $region132: #{tpu_custom_call.1} parent=127 // pred_fallthru
          _
      $region128: #{tpu_custom_call.1} parent=5 // pred_fallthru
        _
    $region6: #{tpu_custom_call.1} parent=1 // loop_footer
      %s36 = sadd.s32 1, %s32
    $region7: #{tpu_custom_call.1} parent=1 // loop_footer_branch
      %31 = sbr.rel target = $region3
    $region8: #{tpu_custom_call.1} parent=1 // loop_exit
      _
    %2271 = vsyncpa [#allocation5], 1
    %s2272 = scalar_lea.sflag [#allocation5], 1
    %2273 = vsyncpa %s2272, 1
    %2274 = vsyncpa [#allocation8], 1
    %s2275 = scalar_lea.sflag [#allocation8], 1
    %2276 = vsyncpa %s2275, 1
    %2277 = vsyncpa [#allocation11], 1
    %2278 = vsyncpa [#allocation14], 1
    %2279 = vsyncpa [#allocation17], 1
    %2280 = vsyncpa [#allocation20], 1
    %2281 = vsyncpa [#allocation23], 1
    %2282 = vsyncpa [#allocation6], 1
    %s2283 = scalar_lea.sflag [#allocation6], 1
    %2284 = vsyncpa %s2283, 1

</llo_original>
